<compile_context>
chip_gen: v7x
topology: tpu7x:2x2x1
jax: 0.10.0
libtpu: 0.0.40
codegen_flags: <defaults>
</compile_context>

<pallas_src>
import math
import functools

import jax
import jax.numpy as jnp
from jax.experimental import pallas as pl
from jax.experimental.pallas import tpu as pltpu


# ------------------------------ small helpers -------------------------------- #
def _pick_q_tile(seq_len, max_tile=256):
    """Largest divisor of seq_len that is <= max_tile and 8-aligned (else seq_len)."""
    if seq_len <= max_tile:
        return seq_len
    for t in range(max_tile, 7, -1):
        if seq_len % t == 0 and t % 8 == 0:
            return t
    return seq_len


def _vmem_limit_bytes():
    """~75% of this generation's physical VMEM (64 MiB v7x, 128 MiB v5e/v6e)."""
    cap = 128 * 1024 * 1024
    try:
        info = pltpu.get_tpu_info()
        cap = int(getattr(info, "vmem_capacity_bytes", cap)) or cap
    except Exception:
        pass
    return max(32 * 1024 * 1024, int(cap * 3 // 4))


# ------------------------- Fused, q-tiled MHA kernel -------------------------- #
def _mha_kernel(*refs, heads_num, per_head_size, inner, tq, num_q_tiles, scale,
                shared_qkv, has_probs, compute_dtype):
    """grid = (batch, q_tile); one step = one [TQ, S] attention block of one batch."""
    if shared_qkv:
        xq_ref = xk_ref = xv_ref = refs[0]
        mask_ref, wqkv_ref, bqkv_ref, wo_ref, bo_ref = refs[1:6]
        rest = refs[6:]
    else:
        xq_ref, xk_ref, xv_ref, mask_ref, wqkv_ref, bqkv_ref, wo_ref, bo_ref = refs[:8]
        rest = refs[8:]
    out_ref = rest[0]
    probs_ref = rest[1] if has_probs else None
    q_sc, k_sc, v_sc = rest[2:] if has_probs else rest[1:]

    d = per_head_size
    qt = pl.program_id(1)

    # ---- Once per batch element: fused QKV projection staged into VMEM scratch ----
    @pl.when(qt == 0)
    def _project_qkv():
        if shared_qkv:
            # One MXU pass with N = 3*inner instead of three N = inner passes.
            qkv = jnp.dot(xq_ref[0], wqkv_ref[...],
                          preferred_element_type=jnp.float32) + bqkv_ref[...]
            q2d = qkv[:, :inner] * scale          # fold 1/sqrt(d) into q, not scores
            k2d = qkv[:, inner:2 * inner]
            v2d = qkv[:, 2 * inner:]
        else:
            q2d = (jnp.dot(xq_ref[0], wqkv_ref[:, :inner],
                           preferred_element_type=jnp.float32)
                   + bqkv_ref[:, :inner]) * scale
            k2d = (jnp.dot(xk_ref[0], wqkv_ref[:, inner:2 * inner],
                           preferred_element_type=jnp.float32)
                   + bqkv_ref[:, inner:2 * inner])
            v2d = (jnp.dot(xv_ref[0], wqkv_ref[:, 2 * inner:],
                           preferred_element_type=jnp.float32)
                   + bqkv_ref[:, 2 * inner:])
        q2d = q2d.astype(compute_dtype)
        k2d = k2d.astype(compute_dtype)
        v2d = v2d.astype(compute_dtype)
        # Head split done once per batch element (not per q-tile / per dot operand).
        for h in range(heads_num):
            cols = slice(h * d, (h + 1) * d)
            k_sc[h] = k2d[:, cols]
            v_sc[h] = v2d[:, cols]
            for t in range(num_q_tiles):
                q_sc[t, h] = q2d[t * tq:(t + 1) * tq, cols]

    # ------------------------ Per q-tile attention block ------------------------ #
    q_r = q_sc[qt]                    # [heads, TQ, d]  (scale already folded in)
    k_all = k_sc[...]                 # [heads, S,  d]
    v_all = v_sc[...]                 # [heads, S,  d]
    # Additive mask rows: (1, S) key-padding row or (TQ, S) full block.
    add_mask = mask_ref[0, 0].astype(jnp.float32)[None]

    scores = jnp.einsum('hqd,hkd->hqk', q_r, k_all,
                        preferred_element_type=jnp.float32)
    scores = scores + add_mask
    # TODO(synk): position_bias (forward default None) is not supported.

    # Numerically-stable softmax in f32 (mask must be a large finite negative,
    # e.g. -10000, not -inf, so fully-masked rows stay NaN-free).
    m = jnp.max(scores, axis=-1, keepdims=True)
    e = jnp.exp(scores - m)
    denom = jnp.sum(e, axis=-1, keepdims=True)
    if has_probs:
        p = e * pl.reciprocal(denom, approx=False)   # exact: stored rows sum to 1
        probs_ref[0] = p.astype(probs_ref.dtype)
    else:
        p = e * pl.reciprocal(denom, approx=True)    # EUP slot, probs never stored
    # TODO(synk): nn.Dropout(probs) is an eval-mode identity here (no train-mode RNG).

    ctx = jnp.einsum('hqk,hkd->hqd', p.astype(compute_dtype), v_all,
                     preferred_element_type=jnp.float32)       # [heads, TQ, d]
    ctx2d = jnp.concatenate([ctx[h] for h in range(heads_num)], axis=-1)  # "unshape"

    out = jnp.dot(ctx2d.astype(compute_dtype), wo_ref[...],
                  preferred_element_type=jnp.float32) + bo_ref[...]
    out_ref[0] = out.astype(out_ref.dtype)


# --------------------------------- Wrapper ------------------------------------ #
def multi_headed_attention(key_x, value_x, query_x, mask, params, *,
                           heads_num, per_head_size, with_scale=True,
                           return_probs=False, probs_dtype=jnp.bfloat16,
                           compute_dtype=jnp.bfloat16, out_dtype=None, q_tile=None):
    """Mirrors MultiHeadedAttention.forward(key, value, query, mask) -> (output, probs).

    mask: additive mask, [B, 1, S, S] (module spec) or compact [B, 1, 1, S].
    Linear weights are [in_features, out_features] (transpose of nn.Linear.weight).
    probs is only computed/stored when return_probs=True; otherwise None is returned.
    """
    wq, bq, wk, bk, wv, bv, wo, bo = params
    B, S, Hd = query_x.shape
    inner = heads_num * per_head_size
    assert mask.ndim == 4 and mask.shape[0] == B and mask.shape[1] == 1
    assert mask.shape[3] == S and mask.shape[2] in (1, S)
    mq = mask.shape[2]

    tq = q_tile if q_tile is not None else _pick_q_tile(S)
    assert S % tq == 0, "seq_length must be divisible by the q tile"
    n_qt = S // tq

    scale = (1.0 / math.sqrt(float(per_head_size))) if with_scale else 1.0
    cd = compute_dtype
    odt = out_dtype if out_dtype is not None else query_x.dtype
    shared_qkv = (key_x is query_x) and (value_x is query_x)

    # Fused QKV weights; bf16 MXU operands, f32 biases applied post-accumulation.
    wqkv = jnp.concatenate([wq, wk, wv], axis=1).astype(cd)            # [H, 3*inner]
    bqkv = jnp.concatenate([bq, bk, bv]).reshape(1, 3 * inner).astype(jnp.float32)
    wo_c = wo.astype(cd)
    bo2 = bo.reshape(1, Hd).astype(jnp.float32)
    mask_f = mask.astype(jnp.float32)

    x_spec = pl.BlockSpec((1, S, Hd), lambda b, t: (b, 0, 0))   # resident per batch
    if mq == 1:
        mask_spec = pl.BlockSpec((1, 1, 1, S), lambda b, t: (b, 0, 0, 0))
    else:
        mask_spec = pl.BlockSpec((1, 1, tq, S), lambda b, t: (b, 0, t, 0))
    wqkv_spec = pl.BlockSpec((Hd, 3 * inner), lambda b, t: (0, 0))
    bqkv_spec = pl.BlockSpec((1, 3 * inner), lambda b, t: (0, 0))
    wo_spec = pl.BlockSpec((inner, Hd), lambda b, t: (0, 0))
    bo_spec = pl.BlockSpec((1, Hd), lambda b, t: (0, 0))
    out_spec = pl.BlockSpec((1, tq, Hd), lambda b, t: (b, t, 0))

    if shared_qkv:
        inputs = (query_x.astype(cd), mask_f, wqkv, bqkv, wo_c, bo2)
        in_specs = [x_spec, mask_spec, wqkv_spec, bqkv_spec, wo_spec, bo_spec]
    else:
        inputs = (query_x.astype(cd), key_x.astype(cd), value_x.astype(cd),
                  mask_f, wqkv, bqkv, wo_c, bo2)
        in_specs = [x_spec, x_spec, x_spec, mask_spec,
                    wqkv_spec, bqkv_spec, wo_spec, bo_spec]

    out_sds = jax.ShapeDtypeStruct((B, S, Hd), odt)
    if return_probs:
        out_shape = (out_sds,
                     jax.ShapeDtypeStruct((B, heads_num, S, S), probs_dtype))
        out_specs = (out_spec,
                     pl.BlockSpec((1, heads_num, tq, S), lambda b, t: (b, 0, t, 0)))
    else:
        out_shape = out_sds
        out_specs = out_spec

    scratch_shapes = [
        pltpu.VMEM((n_qt, heads_num, tq, per_head_size), cd),   # q (scale folded)
        pltpu.VMEM((heads_num, S, per_head_size), cd),          # k
        pltpu.VMEM((heads_num, S, per_head_size), cd),          # v
    ]

    kernel = functools.partial(
        _mha_kernel, heads_num=heads_num, per_head_size=per_head_size, inner=inner,
        tq=tq, num_q_tiles=n_qt, scale=scale, shared_qkv=shared_qkv,
        has_probs=return_probs, compute_dtype=cd)

    # Advisory cost estimate for XLA scheduling around the custom call.
    flops = (2 * B * S * Hd * 3 * inner                       # fused QKV projection
             + 4 * B * heads_num * S * S * per_head_size      # QK^T + probs@V
             + 2 * B * S * inner * Hd)                        # output projection
    transcendentals = B * heads_num * S * S
    bytes_accessed = sum(int(a.size) * a.dtype.itemsize for a in inputs)
    bytes_accessed += B * S * Hd * jnp.dtype(odt).itemsize
    if return_probs:
        bytes_accessed += B * heads_num * S * S * jnp.dtype(probs_dtype).itemsize

    res = pl.pallas_call(
        kernel,
        out_shape=out_shape,
        grid_spec=pltpu.PrefetchScalarGridSpec(
            num_scalar_prefetch=0,
            grid=(B, n_qt),
            in_specs=in_specs,
            out_specs=out_specs,
            scratch_shapes=scratch_shapes),
        compiler_params=pltpu.CompilerParams(
            # Batch axis feeds both v7x TensorCores; the q-tile axis carries the
            # per-batch K/V scratch, so it must stay sequential ("arbitrary").
            dimension_semantics=("parallel", "arbitrary"),
            vmem_limit_bytes=_vmem_limit_bytes()),
        cost_estimate=pl.CostEstimate(flops=int(flops),
                                      transcendentals=int(transcendentals),
                                      bytes_accessed=int(bytes_accessed)),
    )(*inputs)

    if return_probs:
        out, probs = res
        return out, probs
    return res, None


# ---------------------------- Pure-JAX reference ------------------------------ #
def ref_forward(key_x, value_x, query_x, mask, params, *, heads_num, per_head_size,
                with_scale=True):
    wq, bq, wk, bk, wv, bv, wo, bo = params
    B, S, Hd = query_x.shape

    def proj(x, w, b):
        y = x @ w + b
        return y.reshape(B, S, heads_num, per_head_size).transpose(0, 2, 1, 3)

    q = proj(query_x, wq, bq)
    k = proj(key_x, wk, bk)
    v = proj(value_x, wv, bv)
    scores = jnp.einsum('bhqd,bhkd->bhqk', q, k)
    if with_scale:
        scores = scores / math.sqrt(float(per_head_size))
    scores = scores + mask
    probs = jax.nn.softmax(scores, axis=-1)
    ctx = jnp.einsum('bhqk,bhkd->bhqd', probs, v)
    ctx = ctx.transpose(0, 2, 1, 3).reshape(B, S, heads_num * per_head_size)
    out = ctx @ wo + bo
    return out, probs


# ------------------------------------ Main ------------------------------------ #
if __name__ == "__main__":
    heads_num, per_head_size = 4, 8
    Hd = 32
    inner = heads_num * per_head_size

    root = jax.random.PRNGKey(0)
    keys = jax.random.split(root, 16)

    def uinit(k, shape, fan_in):
        bound = 1.0 / math.sqrt(float(fan_in))
        return jax.random.uniform(k, shape, jnp.float32, -bound, bound)

    wq = uinit(keys[0], (Hd, inner), Hd); bq = uinit(keys[1], (inner,), Hd)
    wk = uinit(keys[2], (Hd, inner), Hd); bk = uinit(keys[3], (inner,), Hd)
    wv = uinit(keys[4], (Hd, inner), Hd); bv = uinit(keys[5], (inner,), Hd)
    wo = uinit(keys[6], (inner, Hd), inner); bo = uinit(keys[7], (Hd,), inner)
    params = (wq, bq, wk, bk, wv, bv, wo, bo)

    # ------- Test 1: distinct key/value/query, compact mask, f32 probs out -------
    B, S = 2, 8
    key_x = jax.random.normal(keys[8], (B, S, Hd), jnp.float32)
    value_x = jax.random.normal(keys[9], (B, S, Hd), jnp.float32)
    query_x = jax.random.normal(keys[10], (B, S, Hd), jnp.float32)
    lengths = jnp.array([8, 5])
    valid = (jnp.arange(S)[None, :] < lengths[:, None]).astype(jnp.float32)
    mask_row = (1.0 - valid)[:, None, None, :] * (-10000.0)            # [B,1,1,S]

    out, probs = multi_headed_attention(
        key_x, value_x, query_x, mask_row, params,
        heads_num=heads_num, per_head_size=per_head_size,
        return_probs=True, probs_dtype=jnp.float32)
    out = jax.block_until_ready(out)
    probs = jax.block_until_ready(probs)
    out_want, probs_want = ref_forward(
        key_x, value_x, query_x, mask_row, params,
        heads_num=heads_num, per_head_size=per_head_size)
    assert out.shape == (B, S, Hd) and probs.shape == (B, heads_num, S, S)
    # Tolerances account for bf16 MXU operands (f32 accumulation).
    assert jnp.allclose(out, out_want, atol=3e-2, rtol=3e-2)
    assert jnp.allclose(probs, probs_want, atol=3e-2, rtol=0)

    # ---- Test 2: self-attention (shared x), full mask, 2 q-tiles, bf16 probs ----
    B, S = 2, 16
    x = jax.random.normal(keys[11], (B, S, Hd), jnp.float32)
    lengths = jnp.array([16, 11])
    valid = (jnp.arange(S)[None, :] < lengths[:, None]).astype(jnp.float32)
    mask_row2 = (1.0 - valid)[:, None, None, :] * (-10000.0)           # [B,1,1,S]
    mask_full = jnp.broadcast_to(mask_row2, (B, 1, S, S)).astype(jnp.float32)

    out2, probs2 = multi_headed_attention(
        x, x, x, mask_full, params,
        heads_num=heads_num, per_head_size=per_head_size,
        return_probs=True, q_tile=8)
    out2 = jax.block_until_ready(out2)
    probs2 = jax.block_until_ready(probs2)
    out2_want, probs2_want = ref_forward(
        x, x, x, mask_full, params,
        heads_num=heads_num, per_head_size=per_head_size)
    assert jnp.allclose(out2, out2_want, atol=3e-2, rtol=3e-2)
    assert jnp.allclose(probs2.astype(jnp.float32), probs2_want, atol=3e-2, rtol=0)

    # ------------ Test 3: default path (no probs writeback), compact mask --------
    out3, none_probs = multi_headed_attention(
        x, x, x, mask_row2, params,
        heads_num=heads_num, per_head_size=per_head_size, q_tile=8)
    out3 = jax.block_until_ready(out3)
    assert none_probs is None
    assert jnp.allclose(out3, out2_want, atol=3e-2, rtol=3e-2)

    print("KERNEL_OK")
</pallas_src>

<mosaic_0001>
module attributes {stable_mosaic.version = 11 : i64} {
  func.func @_mha_kernel(%arg0: i32, %arg1: i32, %arg2: memref<1x8x32xbf16, #tpu.memory_space<vmem>>, %arg3: memref<1x8x32xbf16, #tpu.memory_space<vmem>>, %arg4: memref<1x8x32xbf16, #tpu.memory_space<vmem>>, %arg5: memref<1x1x1x8xf32, #tpu.memory_space<vmem>>, %arg6: memref<32x96xbf16, #tpu.memory_space<vmem>>, %arg7: memref<1x96xf32, #tpu.memory_space<vmem>>, %arg8: memref<32x32xbf16, #tpu.memory_space<vmem>>, %arg9: memref<1x32xf32, #tpu.memory_space<vmem>>, %arg10: memref<1x8x32xf32, #tpu.memory_space<vmem>>, %arg11: memref<1x4x8x8xf32, #tpu.memory_space<vmem>>, %arg12: memref<1x4x8x8xbf16, #tpu.memory_space<vmem>>, %arg13: memref<4x8x8xbf16, #tpu.memory_space<vmem>>, %arg14: memref<4x8x8xbf16, #tpu.memory_space<vmem>>) attributes {dimension_semantics = [#tpu.dimension_semantics<parallel>, #tpu.dimension_semantics<arbitrary>], iteration_bounds = array<i64: 2, 1>, scalar_prefetch = 0 : i64, scratch_operands = 3 : i64, tpu.core_type = #tpu.core_type<tc>, window_params = [{transform_indices = @transform_0, window_bounds = array<i64: 1, 8, 32>}, {transform_indices = @transform_1, window_bounds = array<i64: 1, 8, 32>}, {transform_indices = @transform_2, window_bounds = array<i64: 1, 8, 32>}, {transform_indices = @transform_3, window_bounds = array<i64: 1, 1, 1, 8>}, {pipeline_mode = #tpu.pipeline_mode<synchronous>, transform_indices = @transform_4, window_bounds = array<i64: 32, 96>}, {pipeline_mode = #tpu.pipeline_mode<synchronous>, transform_indices = @transform_5, window_bounds = array<i64: 1, 96>}, {pipeline_mode = #tpu.pipeline_mode<synchronous>, transform_indices = @transform_6, window_bounds = array<i64: 32, 32>}, {pipeline_mode = #tpu.pipeline_mode<synchronous>, transform_indices = @transform_7, window_bounds = array<i64: 1, 32>}, {transform_indices = @transform_8, window_bounds = array<i64: 1, 8, 32>}, {transform_indices = @transform_9, window_bounds = array<i64: 1, 4, 8, 8>}]} {
    %c0_i32 = arith.constant 0 : i32
    %0 = arith.cmpi eq, %arg1, %c0_i32 : i32
    %1 = arith.extui %0 : i1 to i32
    %c0_i32_0 = arith.constant 0 : i32
    %2 = arith.cmpi ne, %1, %c0_i32_0 : i32
    scf.if %2 {
      %c0_28 = arith.constant 0 : index
      %c0_29 = arith.constant 0 : index
      %c0_30 = arith.constant 0 : index
      %47 = vector.load %arg2[%c0_28, %c0_29, %c0_30] : memref<1x8x32xbf16, #tpu.memory_space<vmem>>, vector<1x8x32xbf16>
      %48 = vector.shape_cast %47 : vector<1x8x32xbf16> to vector<8x32xbf16>
      %c0_31 = arith.constant 0 : index
      %c0_32 = arith.constant 0 : index
      %49 = vector.load %arg6[%c0_31, %c0_32] : memref<32x96xbf16, #tpu.memory_space<vmem>>, vector<32x32xbf16>
      %cst_33 = arith.constant dense<0.000000e+00> : vector<8x32xf32>
      %50 = tpu.matmul %48, %49, %cst_33 {dimension_numbers = #tpu.dot_dimension_numbers<[1], [0], [0], [1], [0, 0, 1, 1], [], []>} : vector<8x32xbf16>, vector<32x32xbf16>, vector<8x32xf32> -> vector<8x32xf32>
      %c0_34 = arith.constant 0 : index
      %c0_35 = arith.constant 0 : index
      %51 = vector.load %arg7[%c0_34, %c0_35] : memref<1x96xf32, #tpu.memory_space<vmem>>, vector<1x32xf32>
      %52 = vector.broadcast %51 : vector<1x32xf32> to vector<8x32xf32>
      %53 = arith.addf %50, %52 : vector<8x32xf32>
      %cst_36 = arith.constant 0.353553385 : f32
      %54 = vector.broadcast %cst_36 : f32 to vector<8x32xf32>
      %55 = arith.mulf %53, %54 : vector<8x32xf32>
      %c0_37 = arith.constant 0 : index
      %c0_38 = arith.constant 0 : index
      %c0_39 = arith.constant 0 : index
      %56 = vector.load %arg3[%c0_37, %c0_38, %c0_39] : memref<1x8x32xbf16, #tpu.memory_space<vmem>>, vector<1x8x32xbf16>
      %57 = vector.shape_cast %56 : vector<1x8x32xbf16> to vector<8x32xbf16>
      %c0_40 = arith.constant 0 : index
      %c32 = arith.constant 32 : index
      %58 = vector.load %arg6[%c0_40, %c32] : memref<32x96xbf16, #tpu.memory_space<vmem>>, vector<32x32xbf16>
      %cst_41 = arith.constant dense<0.000000e+00> : vector<8x32xf32>
      %59 = tpu.matmul %57, %58, %cst_41 {dimension_numbers = #tpu.dot_dimension_numbers<[1], [0], [0], [1], [0, 0, 1, 1], [], []>} : vector<8x32xbf16>, vector<32x32xbf16>, vector<8x32xf32> -> vector<8x32xf32>
      %c0_42 = arith.constant 0 : index
      %c32_43 = arith.constant 32 : index
      %60 = vector.load %arg7[%c0_42, %c32_43] : memref<1x96xf32, #tpu.memory_space<vmem>>, vector<1x32xf32>
      %61 = vector.broadcast %60 : vector<1x32xf32> to vector<8x32xf32>
      %62 = arith.addf %59, %61 : vector<8x32xf32>
      %c0_44 = arith.constant 0 : index
      %c0_45 = arith.constant 0 : index
      %c0_46 = arith.constant 0 : index
      %63 = vector.load %arg4[%c0_44, %c0_45, %c0_46] : memref<1x8x32xbf16, #tpu.memory_space<vmem>>, vector<1x8x32xbf16>
      %64 = vector.shape_cast %63 : vector<1x8x32xbf16> to vector<8x32xbf16>
      %c0_47 = arith.constant 0 : index
      %c64 = arith.constant 64 : index
      %65 = vector.load %arg6[%c0_47, %c64] : memref<32x96xbf16, #tpu.memory_space<vmem>>, vector<32x32xbf16>
      %cst_48 = arith.constant dense<0.000000e+00> : vector<8x32xf32>
      %66 = tpu.matmul %64, %65, %cst_48 {dimension_numbers = #tpu.dot_dimension_numbers<[1], [0], [0], [1], [0, 0, 1, 1], [], []>} : vector<8x32xbf16>, vector<32x32xbf16>, vector<8x32xf32> -> vector<8x32xf32>
      %c0_49 = arith.constant 0 : index
      %c64_50 = arith.constant 64 : index
      %67 = vector.load %arg7[%c0_49, %c64_50] : memref<1x96xf32, #tpu.memory_space<vmem>>, vector<1x32xf32>
      %68 = vector.broadcast %67 : vector<1x32xf32> to vector<8x32xf32>
      %69 = arith.addf %66, %68 : vector<8x32xf32>
      %70 = arith.truncf %55 : vector<8x32xf32> to vector<8x32xbf16>
      %71 = arith.truncf %62 : vector<8x32xf32> to vector<8x32xbf16>
      %72 = arith.truncf %69 : vector<8x32xf32> to vector<8x32xbf16>
      %73 = vector.extract_strided_slice %71 {offsets = [0, 0], sizes = [8, 8], strides = [1, 1]} : vector<8x32xbf16> to vector<8x8xbf16>
      %c0_51 = arith.constant 0 : index
      %c0_52 = arith.constant 0 : index
      %c0_53 = arith.constant 0 : index
      %74 = vector.load %arg13[%c0_51, %c0_52, %c0_53] : memref<4x8x8xbf16, #tpu.memory_space<vmem>>, vector<1x8x8xbf16>
      %75 = vector.shape_cast %74 : vector<1x8x8xbf16> to vector<8x8xbf16>
      %76 = vector.shape_cast %73 : vector<8x8xbf16> to vector<1x8x8xbf16>
      tpu.vector_store %arg13[%c0_51, %c0_52, %c0_53], %76 {strides = array<i32>} : memref<4x8x8xbf16, #tpu.memory_space<vmem>>, vector<1x8x8xbf16>,
      %77 = vector.extract_strided_slice %72 {offsets = [0, 0], sizes = [8, 8], strides = [1, 1]} : vector<8x32xbf16> to vector<8x8xbf16>
      %c0_54 = arith.constant 0 : index
      %c0_55 = arith.constant 0 : index
      %c0_56 = arith.constant 0 : index
      %78 = vector.load %arg14[%c0_54, %c0_55, %c0_56] : memref<4x8x8xbf16, #tpu.memory_space<vmem>>, vector<1x8x8xbf16>
      %79 = vector.shape_cast %78 : vector<1x8x8xbf16> to vector<8x8xbf16>
      %80 = vector.shape_cast %77 : vector<8x8xbf16> to vector<1x8x8xbf16>
      tpu.vector_store %arg14[%c0_54, %c0_55, %c0_56], %80 {strides = array<i32>} : memref<4x8x8xbf16, #tpu.memory_space<vmem>>, vector<1x8x8xbf16>,
      %81 = vector.extract_strided_slice %70 {offsets = [0, 0], sizes = [8, 8], strides = [1, 1]} : vector<8x32xbf16> to vector<8x8xbf16>
      %c0_57 = arith.constant 0 : index
      %c0_58 = arith.constant 0 : index
      %c0_59 = arith.constant 0 : index
      %c0_60 = arith.constant 0 : index
      %82 = vector.load %arg12[%c0_57, %c0_58, %c0_59, %c0_60] : memref<1x4x8x8xbf16, #tpu.memory_space<vmem>>, vector<1x1x8x8xbf16>
      %83 = vector.shape_cast %82 : vector<1x1x8x8xbf16> to vector<8x8xbf16>
      %84 = vector.shape_cast %81 : vector<8x8xbf16> to vector<1x1x8x8xbf16>
      tpu.vector_store %arg12[%c0_57, %c0_58, %c0_59, %c0_60], %84 {strides = array<i32>} : memref<1x4x8x8xbf16, #tpu.memory_space<vmem>>, vector<1x1x8x8xbf16>,
      %85 = vector.extract_strided_slice %71 {offsets = [0, 8], sizes = [8, 8], strides = [1, 1]} : vector<8x32xbf16> to vector<8x8xbf16>
      %c1 = arith.constant 1 : index
      %c0_61 = arith.constant 0 : index
      %c0_62 = arith.constant 0 : index
      %86 = vector.load %arg13[%c1, %c0_61, %c0_62] : memref<4x8x8xbf16, #tpu.memory_space<vmem>>, vector<1x8x8xbf16>
      %87 = vector.shape_cast %86 : vector<1x8x8xbf16> to vector<8x8xbf16>
      %88 = vector.shape_cast %85 : vector<8x8xbf16> to vector<1x8x8xbf16>
      tpu.vector_store %arg13[%c1, %c0_61, %c0_62], %88 {strides = array<i32>} : memref<4x8x8xbf16, #tpu.memory_space<vmem>>, vector<1x8x8xbf16>,
      %89 = vector.extract_strided_slice %72 {offsets = [0, 8], sizes = [8, 8], strides = [1, 1]} : vector<8x32xbf16> to vector<8x8xbf16>
      %c1_63 = arith.constant 1 : index
      %c0_64 = arith.constant 0 : index
      %c0_65 = arith.constant 0 : index
      %90 = vector.load %arg14[%c1_63, %c0_64, %c0_65] : memref<4x8x8xbf16, #tpu.memory_space<vmem>>, vector<1x8x8xbf16>
      %91 = vector.shape_cast %90 : vector<1x8x8xbf16> to vector<8x8xbf16>
      %92 = vector.shape_cast %89 : vector<8x8xbf16> to vector<1x8x8xbf16>
      tpu.vector_store %arg14[%c1_63, %c0_64, %c0_65], %92 {strides = array<i32>} : memref<4x8x8xbf16, #tpu.memory_space<vmem>>, vector<1x8x8xbf16>,
      %93 = vector.extract_strided_slice %70 {offsets = [0, 8], sizes = [8, 8], strides = [1, 1]} : vector<8x32xbf16> to vector<8x8xbf16>
      %c0_66 = arith.constant 0 : index
      %c1_67 = arith.constant 1 : index
      %c0_68 = arith.constant 0 : index
      %c0_69 = arith.constant 0 : index
      %94 = vector.load %arg12[%c0_66, %c1_67, %c0_68, %c0_69] : memref<1x4x8x8xbf16, #tpu.memory_space<vmem>>, vector<1x1x8x8xbf16>
      %95 = vector.shape_cast %94 : vector<1x1x8x8xbf16> to vector<8x8xbf16>
      %96 = vector.shape_cast %93 : vector<8x8xbf16> to vector<1x1x8x8xbf16>
      tpu.vector_store %arg12[%c0_66, %c1_67, %c0_68, %c0_69], %96 {strides = array<i32>} : memref<1x4x8x8xbf16, #tpu.memory_space<vmem>>, vector<1x1x8x8xbf16>,
      %97 = vector.extract_strided_slice %71 {offsets = [0, 16], sizes = [8, 8], strides = [1, 1]} : vector<8x32xbf16> to vector<8x8xbf16>
      %c2 = arith.constant 2 : index
      %c0_70 = arith.constant 0 : index
      %c0_71 = arith.constant 0 : index
      %98 = vector.load %arg13[%c2, %c0_70, %c0_71] : memref<4x8x8xbf16, #tpu.memory_space<vmem>>, vector<1x8x8xbf16>
      %99 = vector.shape_cast %98 : vector<1x8x8xbf16> to vector<8x8xbf16>
      %100 = vector.shape_cast %97 : vector<8x8xbf16> to vector<1x8x8xbf16>
      tpu.vector_store %arg13[%c2, %c0_70, %c0_71], %100 {strides = array<i32>} : memref<4x8x8xbf16, #tpu.memory_space<vmem>>, vector<1x8x8xbf16>,
      %101 = vector.extract_strided_slice %72 {offsets = [0, 16], sizes = [8, 8], strides = [1, 1]} : vector<8x32xbf16> to vector<8x8xbf16>
      %c2_72 = arith.constant 2 : index
      %c0_73 = arith.constant 0 : index
      %c0_74 = arith.constant 0 : index
      %102 = vector.load %arg14[%c2_72, %c0_73, %c0_74] : memref<4x8x8xbf16, #tpu.memory_space<vmem>>, vector<1x8x8xbf16>
      %103 = vector.shape_cast %102 : vector<1x8x8xbf16> to vector<8x8xbf16>
      %104 = vector.shape_cast %101 : vector<8x8xbf16> to vector<1x8x8xbf16>
      tpu.vector_store %arg14[%c2_72, %c0_73, %c0_74], %104 {strides = array<i32>} : memref<4x8x8xbf16, #tpu.memory_space<vmem>>, vector<1x8x8xbf16>,
      %105 = vector.extract_strided_slice %70 {offsets = [0, 16], sizes = [8, 8], strides = [1, 1]} : vector<8x32xbf16> to vector<8x8xbf16>
      %c0_75 = arith.constant 0 : index
      %c2_76 = arith.constant 2 : index
      %c0_77 = arith.constant 0 : index
      %c0_78 = arith.constant 0 : index
      %106 = vector.load %arg12[%c0_75, %c2_76, %c0_77, %c0_78] : memref<1x4x8x8xbf16, #tpu.memory_space<vmem>>, vector<1x1x8x8xbf16>
      %107 = vector.shape_cast %106 : vector<1x1x8x8xbf16> to vector<8x8xbf16>
      %108 = vector.shape_cast %105 : vector<8x8xbf16> to vector<1x1x8x8xbf16>
      tpu.vector_store %arg12[%c0_75, %c2_76, %c0_77, %c0_78], %108 {strides = array<i32>} : memref<1x4x8x8xbf16, #tpu.memory_space<vmem>>, vector<1x1x8x8xbf16>,
      %109 = vector.extract_strided_slice %71 {offsets = [0, 24], sizes = [8, 8], strides = [1, 1]} : vector<8x32xbf16> to vector<8x8xbf16>
      %c3 = arith.constant 3 : index
      %c0_79 = arith.constant 0 : index
      %c0_80 = arith.constant 0 : index
      %110 = vector.load %arg13[%c3, %c0_79, %c0_80] : memref<4x8x8xbf16, #tpu.memory_space<vmem>>, vector<1x8x8xbf16>
      %111 = vector.shape_cast %110 : vector<1x8x8xbf16> to vector<8x8xbf16>
      %112 = vector.shape_cast %109 : vector<8x8xbf16> to vector<1x8x8xbf16>
      tpu.vector_store %arg13[%c3, %c0_79, %c0_80], %112 {strides = array<i32>} : memref<4x8x8xbf16, #tpu.memory_space<vmem>>, vector<1x8x8xbf16>,
      %113 = vector.extract_strided_slice %72 {offsets = [0, 24], sizes = [8, 8], strides = [1, 1]} : vector<8x32xbf16> to vector<8x8xbf16>
      %c3_81 = arith.constant 3 : index
      %c0_82 = arith.constant 0 : index
      %c0_83 = arith.constant 0 : index
      %114 = vector.load %arg14[%c3_81, %c0_82, %c0_83] : memref<4x8x8xbf16, #tpu.memory_space<vmem>>, vector<1x8x8xbf16>
      %115 = vector.shape_cast %114 : vector<1x8x8xbf16> to vector<8x8xbf16>
      %116 = vector.shape_cast %113 : vector<8x8xbf16> to vector<1x8x8xbf16>
      tpu.vector_store %arg14[%c3_81, %c0_82, %c0_83], %116 {strides = array<i32>} : memref<4x8x8xbf16, #tpu.memory_space<vmem>>, vector<1x8x8xbf16>,
      %117 = vector.extract_strided_slice %70 {offsets = [0, 24], sizes = [8, 8], strides = [1, 1]} : vector<8x32xbf16> to vector<8x8xbf16>
      %c0_84 = arith.constant 0 : index
      %c3_85 = arith.constant 3 : index
      %c0_86 = arith.constant 0 : index
      %c0_87 = arith.constant 0 : index
      %118 = vector.load %arg12[%c0_84, %c3_85, %c0_86, %c0_87] : memref<1x4x8x8xbf16, #tpu.memory_space<vmem>>, vector<1x1x8x8xbf16>
      %119 = vector.shape_cast %118 : vector<1x1x8x8xbf16> to vector<8x8xbf16>
      %120 = vector.shape_cast %117 : vector<8x8xbf16> to vector<1x1x8x8xbf16>
      tpu.vector_store %arg12[%c0_84, %c3_85, %c0_86, %c0_87], %120 {strides = array<i32>} : memref<1x4x8x8xbf16, #tpu.memory_space<vmem>>, vector<1x1x8x8xbf16>,
    } else {
    }
    %3 = arith.index_cast %arg1 : i32 to index
    %c0 = arith.constant 0 : index
    %c0_1 = arith.constant 0 : index
    %c0_2 = arith.constant 0 : index
    %4 = vector.load %arg12[%3, %c0, %c0_1, %c0_2] : memref<1x4x8x8xbf16, #tpu.memory_space<vmem>>, vector<1x4x8x8xbf16>
    %5 = vector.shape_cast %4 : vector<1x4x8x8xbf16> to vector<4x8x8xbf16>
    %c0_3 = arith.constant 0 : index
    %c0_4 = arith.constant 0 : index
    %c0_5 = arith.constant 0 : index
    %6 = vector.load %arg13[%c0_3, %c0_4, %c0_5] : memref<4x8x8xbf16, #tpu.memory_space<vmem>>, vector<4x8x8xbf16>
    %c0_6 = arith.constant 0 : index
    %c0_7 = arith.constant 0 : index
    %c0_8 = arith.constant 0 : index
    %7 = vector.load %arg14[%c0_6, %c0_7, %c0_8] : memref<4x8x8xbf16, #tpu.memory_space<vmem>>, vector<4x8x8xbf16>
    %c0_9 = arith.constant 0 : index
    %c0_10 = arith.constant 0 : index
    %c0_11 = arith.constant 0 : index
    %c0_12 = arith.constant 0 : index
    %8 = vector.load %arg5[%c0_9, %c0_10, %c0_11, %c0_12] : memref<1x1x1x8xf32, #tpu.memory_space<vmem>>, vector<1x1x1x8xf32>
    %9 = vector.shape_cast %8 : vector<1x1x1x8xf32> to vector<1x8xf32>
    %10 = vector.shape_cast %9 : vector<1x8xf32> to vector<1x1x8xf32>
    "tpu.trace_start"() <{level = 10 : i32, message = "hqd,hkd->hqk"}> : () -> ()
    %cst = arith.constant dense<0.000000e+00> : vector<4x8x8xf32>
    %11 = tpu.matmul %5, %6, %cst {dimension_numbers = #tpu.dot_dimension_numbers<[2], [2], [1], [1], [0, 0, 0, 1, 1, 1], [0], [0]>} : vector<4x8x8xbf16>, vector<4x8x8xbf16>, vector<4x8x8xf32> -> vector<4x8x8xf32>
    "tpu.trace_stop"() : () -> ()
    %12 = vector.broadcast %10 : vector<1x1x8xf32> to vector<4x8x8xf32>
    %13 = arith.addf %11, %12 : vector<4x8x8xf32>
    %cst_13 = arith.constant dense<0xFF800000> : vector<4x8xf32>
    %14 = vector.multi_reduction <maximumf>, %13, %cst_13 [2] : vector<4x8x8xf32> to vector<4x8xf32>
    %15 = vector.shape_cast %14 : vector<4x8xf32> to vector<4x8x1xf32>
    %16 = vector.broadcast %15 : vector<4x8x1xf32> to vector<4x8x8xf32>
    %17 = arith.subf %13, %16 : vector<4x8x8xf32>
    %18 = math.exp %17 : vector<4x8x8xf32>
    %cst_14 = arith.constant dense<0.000000e+00> : vector<4x8xf32>
    %19 = vector.multi_reduction <add>, %18, %cst_14 [2] : vector<4x8x8xf32> to vector<4x8xf32>
    %20 = vector.shape_cast %19 : vector<4x8xf32> to vector<4x8x1xf32>
    %21 = tpu.reciprocal %20 : vector<4x8x1xf32> -> vector<4x8x1xf32>
    %22 = vector.broadcast %21 : vector<4x8x1xf32> to vector<4x8x8xf32>
    %23 = arith.mulf %18, %22 : vector<4x8x8xf32>
    %c0_15 = arith.constant 0 : index
    %c0_16 = arith.constant 0 : index
    %c0_17 = arith.constant 0 : index
    %c0_18 = arith.constant 0 : index
    %24 = vector.load %arg11[%c0_15, %c0_16, %c0_17, %c0_18] : memref<1x4x8x8xf32, #tpu.memory_space<vmem>>, vector<1x4x8x8xf32>
    %25 = vector.shape_cast %24 : vector<1x4x8x8xf32> to vector<4x8x8xf32>
    %26 = vector.shape_cast %23 : vector<4x8x8xf32> to vector<1x4x8x8xf32>
    tpu.vector_store %arg11[%c0_15, %c0_16, %c0_17, %c0_18], %26 {strides = array<i32>} : memref<1x4x8x8xf32, #tpu.memory_space<vmem>>, vector<1x4x8x8xf32>,
    %27 = arith.truncf %23 : vector<4x8x8xf32> to vector<4x8x8xbf16>
    "tpu.trace_start"() <{level = 10 : i32, message = "hqk,hkd->hqd"}> : () -> ()
    %cst_19 = arith.constant dense<0.000000e+00> : vector<4x8x8xf32>
    %28 = tpu.matmul %27, %7, %cst_19 {dimension_numbers = #tpu.dot_dimension_numbers<[2], [1], [1], [2], [0, 0, 0, 1, 1, 2], [0], [0]>} : vector<4x8x8xbf16>, vector<4x8x8xbf16>, vector<4x8x8xf32> -> vector<4x8x8xf32>
    "tpu.trace_stop"() : () -> ()
    %29 = vector.extract_strided_slice %28 {offsets = [0, 0, 0], sizes = [1, 8, 8], strides = [1, 1, 1]} : vector<4x8x8xf32> to vector<1x8x8xf32>
    %30 = vector.shape_cast %29 : vector<1x8x8xf32> to vector<8x8xf32>
    %31 = vector.extract_strided_slice %28 {offsets = [1, 0, 0], sizes = [1, 8, 8], strides = [1, 1, 1]} : vector<4x8x8xf32> to vector<1x8x8xf32>
    %32 = vector.shape_cast %31 : vector<1x8x8xf32> to vector<8x8xf32>
    %33 = vector.extract_strided_slice %28 {offsets = [2, 0, 0], sizes = [1, 8, 8], strides = [1, 1, 1]} : vector<4x8x8xf32> to vector<1x8x8xf32>
    %34 = vector.shape_cast %33 : vector<1x8x8xf32> to vector<8x8xf32>
    %35 = vector.extract_strided_slice %28 {offsets = [3, 0, 0], sizes = [1, 8, 8], strides = [1, 1, 1]} : vector<4x8x8xf32> to vector<1x8x8xf32>
    %36 = vector.shape_cast %35 : vector<1x8x8xf32> to vector<8x8xf32>
    %37 = tpu.concatenate %30, %32, %34, %36 in 1 : vector<8x8xf32>, vector<8x8xf32>, vector<8x8xf32>, vector<8x8xf32> -> vector<8x32xf32>
    %38 = arith.truncf %37 : vector<8x32xf32> to vector<8x32xbf16>
    %c0_20 = arith.constant 0 : index
    %c0_21 = arith.constant 0 : index
    %39 = vector.load %arg8[%c0_20, %c0_21] : memref<32x32xbf16, #tpu.memory_space<vmem>>, vector<32x32xbf16>
    %cst_22 = arith.constant dense<0.000000e+00> : vector<8x32xf32>
    %40 = tpu.matmul %38, %39, %cst_22 {dimension_numbers = #tpu.dot_dimension_numbers<[1], [0], [0], [1], [0, 0, 1, 1], [], []>} : vector<8x32xbf16>, vector<32x32xbf16>, vector<8x32xf32> -> vector<8x32xf32>
    %c0_23 = arith.constant 0 : index
    %c0_24 = arith.constant 0 : index
    %41 = vector.load %arg9[%c0_23, %c0_24] : memref<1x32xf32, #tpu.memory_space<vmem>>, vector<1x32xf32>
    %42 = vector.broadcast %41 : vector<1x32xf32> to vector<8x32xf32>
    %43 = arith.addf %40, %42 : vector<8x32xf32>
    %c0_25 = arith.constant 0 : index
    %c0_26 = arith.constant 0 : index
    %c0_27 = arith.constant 0 : index
    %44 = vector.load %arg10[%c0_25, %c0_26, %c0_27] : memref<1x8x32xf32, #tpu.memory_space<vmem>>, vector<1x8x32xf32>
    %45 = vector.shape_cast %44 : vector<1x8x32xf32> to vector<8x32xf32>
    %46 = vector.shape_cast %43 : vector<8x32xf32> to vector<1x8x32xf32>
    tpu.vector_store %arg10[%c0_25, %c0_26, %c0_27], %46 {strides = array<i32>} : memref<1x8x32xf32, #tpu.memory_space<vmem>>, vector<1x8x32xf32>,
    return
  }
  func.func @transform_0(%arg0: i32, %arg1: i32) -> (i32, i32, i32) {
    %c0_i32 = arith.constant 0 : i32
    %c0_i32_0 = arith.constant 0 : i32
    %c0_i32_1 = arith.constant 0 : i32
    return %arg0, %c0_i32, %c0_i32_0 : i32, i32, i32
  }
  func.func @transform_1(%arg0: i32, %arg1: i32) -> (i32, i32, i32) {
    %c0_i32 = arith.constant 0 : i32
    %c0_i32_0 = arith.constant 0 : i32
    %c0_i32_1 = arith.constant 0 : i32
    return %arg0, %c0_i32, %c0_i32_0 : i32, i32, i32
  }
  func.func @transform_2(%arg0: i32, %arg1: i32) -> (i32, i32, i32) {
    %c0_i32 = arith.constant 0 : i32
    %c0_i32_0 = arith.constant 0 : i32
    %c0_i32_1 = arith.constant 0 : i32
    return %arg0, %c0_i32, %c0_i32_0 : i32, i32, i32
  }
  func.func @transform_3(%arg0: i32, %arg1: i32) -> (i32, i32, i32, i32) {
    %c0_i32 = arith.constant 0 : i32
    %c0_i32_0 = arith.constant 0 : i32
    %c0_i32_1 = arith.constant 0 : i32
    %c0_i32_2 = arith.constant 0 : i32
    return %arg0, %c0_i32, %c0_i32_0, %c0_i32_1 : i32, i32, i32, i32
  }
  func.func @transform_4(%arg0: i32, %arg1: i32) -> (i32, i32) {
    %c0_i32 = arith.constant 0 : i32
    %c0_i32_0 = arith.constant 0 : i32
    %c0_i32_1 = arith.constant 0 : i32
    return %c0_i32, %c0_i32_0 : i32, i32
  }
  func.func @transform_5(%arg0: i32, %arg1: i32) -> (i32, i32) {
    %c0_i32 = arith.constant 0 : i32
    %c0_i32_0 = arith.constant 0 : i32
    %c0_i32_1 = arith.constant 0 : i32
    return %c0_i32, %c0_i32_0 : i32, i32
  }
  func.func @transform_6(%arg0: i32, %arg1: i32) -> (i32, i32) {
    %c0_i32 = arith.constant 0 : i32
    %c0_i32_0 = arith.constant 0 : i32
    %c0_i32_1 = arith.constant 0 : i32
    return %c0_i32, %c0_i32_0 : i32, i32
  }
  func.func @transform_7(%arg0: i32, %arg1: i32) -> (i32, i32) {
    %c0_i32 = arith.constant 0 : i32
    %c0_i32_0 = arith.constant 0 : i32
    %c0_i32_1 = arith.constant 0 : i32
    return %c0_i32, %c0_i32_0 : i32, i32
  }
  func.func @transform_8(%arg0: i32, %arg1: i32) -> (i32, i32, i32) {
    %c0_i32 = arith.constant 0 : i32
    %c0_i32_0 = arith.constant 0 : i32
    return %arg0, %arg1, %c0_i32 : i32, i32, i32
  }
  func.func @transform_9(%arg0: i32, %arg1: i32) -> (i32, i32, i32, i32) {
    %c0_i32 = arith.constant 0 : i32
    %c0_i32_0 = arith.constant 0 : i32
    %c0_i32_1 = arith.constant 0 : i32
    return %arg0, %c0_i32, %arg1, %c0_i32_0 : i32, i32, i32, i32
  }
}

</mosaic_0001>

<llo_original>
// kernel: tpu_custom_call.1
$region0: #{tpu_custom_call.1}
  #allocation0 [shape = 'u32[]', space=smem, size = 0x4, offset = 0x4, fixed_abs, tag = 'smem constant byte address 0x4 - core index']
  #allocation1 [shape = 'u32[144,128]{1,0:T(1,128)}', space=vmem, size = 0x12000, scoped, tag = 'internal scratch']
  #allocation2 [shape = 'bf16[1,4,8,8]{3,2,1,0:T(8,128)(2,1)}', space=vmem, size = 0x2000, scoped, tag = 'scratch operand']
  #allocation3 [shape = 'bf16[4,8,8]{2,1,0:T(8,128)(2,1)}', space=vmem, size = 0x2000, scoped, tag = 'scratch operand']
  #allocation4 [shape = 'bf16[4,8,8]{2,1,0:T(8,128)(2,1)}', space=vmem, size = 0x2000, scoped, tag = 'scratch operand']
  %s0 = inlined_call_operand.hbm [shape: bf16[2,8,32], index: 0, kind: input, shape index: {}]
  %s1 = inlined_call_operand.hbm [shape: bf16[2,8,32], index: 1, kind: input, shape index: {}]
  %s2 = inlined_call_operand.hbm [shape: bf16[2,8,32], index: 2, kind: input, shape index: {}]
  %s3 = inlined_call_operand.hbm [shape: f32[2,1,1,8], index: 3, kind: input, shape index: {}]
  %s4 = inlined_call_operand.hbm [shape: bf16[32,96], index: 4, kind: input, shape index: {}]
  %s5 = inlined_call_operand.hbm [shape: f32[1,96], index: 5, kind: input, shape index: {}]
  %s6 = inlined_call_operand.hbm [shape: bf16[32,32], index: 6, kind: input, shape index: {}]
  %s7 = inlined_call_operand.hbm [shape: f32[1,32], index: 7, kind: input, shape index: {}]
  %s8 = inlined_call_operand.hbm [shape: f32[2,8,32], index: 8, kind: output, shape index: {0}]
  %s9 = inlined_call_operand.hbm [shape: f32[2,4,8,8], index: 9, kind: output, shape index: {1}]
  %10 = xla_tuple %s8, %s9
  %s11 = sld [smem:[#allocation0]]
  $region109: #{tpu_custom_call.1} parent=0
    _
  %s13 = ssub.s32 1, %s11
  %s14 = scalar_select 0, %s13, %s11
  $region1: #{tpu_custom_call.1} parent=0
    #allocation5 [shape = 'u8[4096]{0}', space=vmem, size = 0x1000, scoped, tag = 'input window, operand 0']
    #allocation6 [shape = 's32[2]{0}', space=sflag, size = 0x8, scoped, tag = 'scoped memory for tpu_custom_call.1']
    #allocation7 [shape = 's32[2]{0}', space=sflag, size = 0x8, scoped, tag = 'scoped memory for tpu_custom_call.1']
    #allocation8 [shape = 'u8[4096]{0}', space=vmem, size = 0x1000, scoped, tag = 'input window, operand 1']
    #allocation9 [shape = 's32[2]{0}', space=sflag, size = 0x8, scoped, tag = 'scoped memory for tpu_custom_call.1']
    #allocation10 [shape = 'u8[4096]{0}', space=vmem, size = 0x1000, scoped, tag = 'input window, operand 2']
    #allocation11 [shape = 'u8[1024]{0}', space=vmem, size = 0x400, scoped, tag = 'input window, operand 3']
    #allocation12 [shape = 's32[2]{0}', space=sflag, size = 0x8, scoped, tag = 'scoped memory for tpu_custom_call.1']
    #allocation13 [shape = 'u8[8192]{0}', space=vmem, size = 0x2000, scoped, tag = 'input window, operand 4, single buffered']
    #allocation14 [shape = 'u8[512]{0}', space=vmem, size = 0x400, scoped, tag = 'input window, operand 5, single buffered']
    #allocation15 [shape = 's32[1]{0}', space=sflag, size = 0x4, scoped, tag = 'scoped memory for tpu_custom_call.1']
    #allocation16 [shape = 'u8[8192]{0}', space=vmem, size = 0x2000, scoped, tag = 'input window, operand 6, single buffered']
    #allocation17 [shape = 'u8[512]{0}', space=vmem, size = 0x400, scoped, tag = 'input window, operand 7, single buffered']
    #allocation18 [shape = 's32[1]{0}', space=sflag, size = 0x4, scoped, tag = 'scoped memory for tpu_custom_call.1']
    #allocation19 [shape = 'u8[8192]{0}', space=vmem, size = 0x2000, scoped, tag = 'output window, operand 0']
    #allocation20 [shape = 'u8[32768]{0}', space=vmem, size = 0x8000, scoped, tag = 'output window, operand 1']
    #allocation21 [shape = 's32[2]{0}', space=sflag, size = 0x8, scoped, tag = 'scoped memory for tpu_custom_call.1']
    %15 = vsyncpa [#allocation6], 0
    %s16 = scalar_lea.sflag [#allocation6], 1
    %17 = vsyncpa %s16, 0
    %18 = vsyncpa [#allocation9], 0
    %s19 = scalar_lea.sflag [#allocation9], 1
    %20 = vsyncpa %s19, 0
    %21 = vsyncpa [#allocation12], 0
    %s22 = scalar_lea.sflag [#allocation12], 1
    %23 = vsyncpa %s22, 0
    %24 = vsyncpa [#allocation15], 0
    %25 = vsyncpa [#allocation18], 0
    %26 = vsyncpa [#allocation7], 0
    %s27 = scalar_lea.sflag [#allocation7], 1
    %28 = vsyncpa %s27, 0
    %29 = vsyncpa [#allocation21], 0
    %s30 = scalar_lea.sflag [#allocation21], 1
    %31 = vsyncpa %s30, 0
    loop: start=0, step=1, limit=4
    $region2: #{tpu_custom_call.1} parent=1 // loop_pre_header
      _
    $region3: #{tpu_custom_call.1} parent=1 // loop_header
      %s33 = sphi 0, %s37
      %p34 = scmp.ge.s32.totalorder %s33, 4
      %s40 = sphi 0, %s52
      %s41 = sphi 0, %s48
      %s42 = sphi 0, %s40
      %s43 = sphi 0, %s41
      %s44 = sphi 0, %s42
      %s45 = sphi 0, %s43
      %s55 = sphi 0, %s57
      %s58 = sphi 0, %s55
      %s59 = sphi 0, %s58
      %s75 = sphi 0, %s59
      %s81 = sphi 0, %s83
      %s84 = sphi 0, %s81
      %s85 = sphi 0, %s84
      %s101 = sphi 0, %s85
      %s107 = sphi 0, %s109
      %s110 = sphi 0, %s107
      %s111 = sphi 0, %s110
      %s127 = sphi 0, %s111
      %s133 = sphi 0, %s135
      %s136 = sphi 0, %s133
      %s137 = sphi 0, %s136
      %s153 = sphi 0, %s137
      %s157 = sphi 0, %s157
      %s159 = sphi 0, %s157
      %s160 = sphi 0, %s159
      %s174 = sphi 0, %s160
      %s178 = sphi 0, %s178
      %s180 = sphi 0, %s178
      %s181 = sphi 0, %s180
      %s195 = sphi 0, %s181
      %s199 = sphi 0, %s199
      %s201 = sphi 0, %s199
      %s202 = sphi 0, %s201
      %s216 = sphi 0, %s202
      %s220 = sphi 0, %s220
      %s222 = sphi 0, %s220
      %s223 = sphi 0, %s222
      %s237 = sphi 0, %s223
      %s245 = sphi 0, %s247
      %s248 = sphi 0, %s245
      %s249 = sphi 0, %s248
      %s265 = sphi 0, %s249
      %s273 = sphi 0, %s275
      %s276 = sphi 0, %s273
      %s277 = sphi 0, %s276
      %s293 = sphi 0, %s277
    $region4: #{tpu_custom_call.1} parent=1 // loop_header_branch
      %36 = sbr.rel (%p34) target = $region8
    $region5: #{tpu_custom_call.1} parent=1 // loop_body
      %s38 = ssub.s32 %s33, 1
      %s39 = ssub.s32 %s33, 2
      %s46 = sadd.s32 1, %s41
      %p47 = scmp.ge.s32.totalorder %s46, 1
      %s48 = scalar_select %p47, 0, %s46
      %s49 = sadd.s32 1, %s40
      %s50 = scalar_select %p47, %s49, %s40
      %p51 = scmp.ge.s32.totalorder %s50, 2
      %s52 = scalar_select %p51, 0, %s50
      %s53 = ssub.s32 %s40, %s52
      %p54 = scmp.eq.s32.totalorder %s53, 0
      %s56 = sadd.s32 %s55, 1
      %s57 = scalar_select %p54, %s55, %s56
      %p60 = pneg %p54
      %p61 = scmp.eq.s32.totalorder %s33, 1
      %p62 = por %p60, %p61
      %p63 = scmp.ne.s32.totalorder %s55, %s58
      %p64 = scmp.eq.s32.totalorder %s33, 0
      %p65 = por %p63, %p64
      %p66 = scmp.ne.s32.totalorder %s55, %s58
      %p67 = scmp.eq.s32.totalorder %s38, 1
      %p68 = por %p66, %p67
      %p69 = scmp.ne.s32.totalorder %s58, %s59
      %p70 = scmp.eq.s32.totalorder %s38, 0
      %p71 = por %p69, %p70
      %p72 = scmp.ne.s32.totalorder %s58, %s59
      %p73 = scmp.eq.s32.totalorder %s39, 1
      %p74 = por %p72, %p73
      %p76 = scmp.ne.s32.totalorder %s59, %s75
      %p77 = scmp.eq.s32.totalorder %s39, 0
      %p78 = por %p76, %p77
      %s79 = ssub.s32 %s40, %s52
      %p80 = scmp.eq.s32.totalorder %s79, 0
      %s82 = sadd.s32 %s81, 1
      %s83 = scalar_select %p80, %s81, %s82
      %p86 = pneg %p80
      %p87 = scmp.eq.s32.totalorder %s33, 1
      %p88 = por %p86, %p87
      %p89 = scmp.ne.s32.totalorder %s81, %s84
      %p90 = scmp.eq.s32.totalorder %s33, 0
      %p91 = por %p89, %p90
      %p92 = scmp.ne.s32.totalorder %s81, %s84
      %p93 = scmp.eq.s32.totalorder %s38, 1
      %p94 = por %p92, %p93
      %p95 = scmp.ne.s32.totalorder %s84, %s85
      %p96 = scmp.eq.s32.totalorder %s38, 0
      %p97 = por %p95, %p96
      %p98 = scmp.ne.s32.totalorder %s84, %s85
      %p99 = scmp.eq.s32.totalorder %s39, 1
      %p100 = por %p98, %p99
      %p102 = scmp.ne.s32.totalorder %s85, %s101
      %p103 = scmp.eq.s32.totalorder %s39, 0
      %p104 = por %p102, %p103
      %s105 = ssub.s32 %s40, %s52
      %p106 = scmp.eq.s32.totalorder %s105, 0
      %s108 = sadd.s32 %s107, 1
      %s109 = scalar_select %p106, %s107, %s108
      %p112 = pneg %p106
      %p113 = scmp.eq.s32.totalorder %s33, 1
      %p114 = por %p112, %p113
      %p115 = scmp.ne.s32.totalorder %s107, %s110
      %p116 = scmp.eq.s32.totalorder %s33, 0
      %p117 = por %p115, %p116
      %p118 = scmp.ne.s32.totalorder %s107, %s110
      %p119 = scmp.eq.s32.totalorder %s38, 1
      %p120 = por %p118, %p119
      %p121 = scmp.ne.s32.totalorder %s110, %s111
      %p122 = scmp.eq.s32.totalorder %s38, 0
      %p123 = por %p121, %p122
      %p124 = scmp.ne.s32.totalorder %s110, %s111
      %p125 = scmp.eq.s32.totalorder %s39, 1
      %p126 = por %p124, %p125
      %p128 = scmp.ne.s32.totalorder %s111, %s127
      %p129 = scmp.eq.s32.totalorder %s39, 0
      %p130 = por %p128, %p129
      %s131 = ssub.s32 %s40, %s52
      %p132 = scmp.eq.s32.totalorder %s131, 0
      %s134 = sadd.s32 %s133, 1
      %s135 = scalar_select %p132, %s133, %s134
      %p138 = pneg %p132
      %p139 = scmp.eq.s32.totalorder %s33, 1
      %p140 = por %p138, %p139
      %p141 = scmp.ne.s32.totalorder %s133, %s136
      %p142 = scmp.eq.s32.totalorder %s33, 0
      %p143 = por %p141, %p142
      %p144 = scmp.ne.s32.totalorder %s133, %s136
      %p145 = scmp.eq.s32.totalorder %s38, 1
      %p146 = por %p144, %p145
      %p147 = scmp.ne.s32.totalorder %s136, %s137
      %p148 = scmp.eq.s32.totalorder %s38, 0
      %p149 = por %p147, %p148
      %p150 = scmp.ne.s32.totalorder %s136, %s137
      %p151 = scmp.eq.s32.totalorder %s39, 1
      %p152 = por %p150, %p151
      %p154 = scmp.ne.s32.totalorder %s137, %s153
      %p155 = scmp.eq.s32.totalorder %s39, 0
      %p156 = por %p154, %p155
      %s158 = sadd.s32 %s157, 1
      %p161 = scmp.eq.s32.totalorder %s33, 1
      %p162 = scmp.ne.s32.totalorder %s157, %s159
      %p163 = scmp.eq.s32.totalorder %s33, 0
      %p164 = por %p162, %p163
      %p165 = scmp.ne.s32.totalorder %s157, %s159
      %p166 = scmp.eq.s32.totalorder %s38, 1
      %p167 = por %p165, %p166
      %p168 = scmp.ne.s32.totalorder %s159, %s160
      %p169 = scmp.eq.s32.totalorder %s38, 0
      %p170 = por %p168, %p169
      %p171 = scmp.ne.s32.totalorder %s159, %s160
      %p172 = scmp.eq.s32.totalorder %s39, 1
      %p173 = por %p171, %p172
      %p175 = scmp.ne.s32.totalorder %s160, %s174
      %p176 = scmp.eq.s32.totalorder %s39, 0
      %p177 = por %p175, %p176
      %s179 = sadd.s32 %s178, 1
      %p182 = scmp.eq.s32.totalorder %s33, 1
      %p183 = scmp.ne.s32.totalorder %s178, %s180
      %p184 = scmp.eq.s32.totalorder %s33, 0
      %p185 = por %p183, %p184
      %p186 = scmp.ne.s32.totalorder %s178, %s180
      %p187 = scmp.eq.s32.totalorder %s38, 1
      %p188 = por %p186, %p187
      %p189 = scmp.ne.s32.totalorder %s180, %s181
      %p190 = scmp.eq.s32.totalorder %s38, 0
      %p191 = por %p189, %p190
      %p192 = scmp.ne.s32.totalorder %s180, %s181
      %p193 = scmp.eq.s32.totalorder %s39, 1
      %p194 = por %p192, %p193
      %p196 = scmp.ne.s32.totalorder %s181, %s195
      %p197 = scmp.eq.s32.totalorder %s39, 0
      %p198 = por %p196, %p197
      %s200 = sadd.s32 %s199, 1
      %p203 = scmp.eq.s32.totalorder %s33, 1
      %p204 = scmp.ne.s32.totalorder %s199, %s201
      %p205 = scmp.eq.s32.totalorder %s33, 0
      %p206 = por %p204, %p205
      %p207 = scmp.ne.s32.totalorder %s199, %s201
      %p208 = scmp.eq.s32.totalorder %s38, 1
      %p209 = por %p207, %p208
      %p210 = scmp.ne.s32.totalorder %s201, %s202
      %p211 = scmp.eq.s32.totalorder %s38, 0
      %p212 = por %p210, %p211
      %p213 = scmp.ne.s32.totalorder %s201, %s202
      %p214 = scmp.eq.s32.totalorder %s39, 1
      %p215 = por %p213, %p214
      %p217 = scmp.ne.s32.totalorder %s202, %s216
      %p218 = scmp.eq.s32.totalorder %s39, 0
      %p219 = por %p217, %p218
      %s221 = sadd.s32 %s220, 1
      %p224 = scmp.eq.s32.totalorder %s33, 1
      %p225 = scmp.ne.s32.totalorder %s220, %s222
      %p226 = scmp.eq.s32.totalorder %s33, 0
      %p227 = por %p225, %p226
      %p228 = scmp.ne.s32.totalorder %s220, %s222
      %p229 = scmp.eq.s32.totalorder %s38, 1
      %p230 = por %p228, %p229
      %p231 = scmp.ne.s32.totalorder %s222, %s223
      %p232 = scmp.eq.s32.totalorder %s38, 0
      %p233 = por %p231, %p232
      %p234 = scmp.ne.s32.totalorder %s222, %s223
      %p235 = scmp.eq.s32.totalorder %s39, 1
      %p236 = por %p234, %p235
      %p238 = scmp.ne.s32.totalorder %s223, %s237
      %p239 = scmp.eq.s32.totalorder %s39, 0
      %p240 = por %p238, %p239
      %s241 = ssub.s32 %s40, %s52
      %s242 = ssub.s32 %s41, %s48
      %s243 = sor.u32 %s241, %s242
      %p244 = scmp.eq.s32.totalorder %s243, 0
      %s246 = sadd.s32 %s245, 1
      %s247 = scalar_select %p244, %s245, %s246
      %p250 = pneg %p244
      %p251 = scmp.eq.s32.totalorder %s33, 1
      %p252 = por %p250, %p251
      %p253 = scmp.ne.s32.totalorder %s245, %s248
      %p254 = scmp.eq.s32.totalorder %s33, 0
      %p255 = por %p253, %p254
      %p256 = scmp.ne.s32.totalorder %s245, %s248
      %p257 = scmp.eq.s32.totalorder %s38, 1
      %p258 = por %p256, %p257
      %p259 = scmp.ne.s32.totalorder %s248, %s249
      %p260 = scmp.eq.s32.totalorder %s38, 0
      %p261 = por %p259, %p260
      %p262 = scmp.ne.s32.totalorder %s248, %s249
      %p263 = scmp.eq.s32.totalorder %s39, 1
      %p264 = por %p262, %p263
      %p266 = scmp.ne.s32.totalorder %s249, %s265
      %p267 = scmp.eq.s32.totalorder %s39, 0
      %p268 = por %p266, %p267
      %s269 = ssub.s32 %s40, %s52
      %s270 = ssub.s32 %s41, %s48
      %s271 = sor.u32 %s269, %s270
      %p272 = scmp.eq.s32.totalorder %s271, 0
      %s274 = sadd.s32 %s273, 1
      %s275 = scalar_select %p272, %s273, %s274
      %p278 = pneg %p272
      %p279 = scmp.eq.s32.totalorder %s33, 1
      %p280 = por %p278, %p279
      %p281 = scmp.ne.s32.totalorder %s273, %s276
      %p282 = scmp.eq.s32.totalorder %s33, 0
      %p283 = por %p281, %p282
      %p284 = scmp.ne.s32.totalorder %s273, %s276
      %p285 = scmp.eq.s32.totalorder %s38, 1
      %p286 = por %p284, %p285
      %p287 = scmp.ne.s32.totalorder %s276, %s277
      %p288 = scmp.eq.s32.totalorder %s38, 0
      %p289 = por %p287, %p288
      %p290 = scmp.ne.s32.totalorder %s276, %s277
      %p291 = scmp.eq.s32.totalorder %s39, 1
      %p292 = por %p290, %p291
      %p294 = scmp.ne.s32.totalorder %s277, %s293
      %p295 = scmp.eq.s32.totalorder %s39, 0
      %p296 = por %p294, %p295
      %p297 = scmp.le.s32.totalorder 1, %s33
      %p298 = scmp.lt.s32.totalorder %s33, 3
      %p299 = pnand %p297, %p298
      %p300 = pneg %p299
      // Predicated region
      $region9: #{tpu_custom_call.1} parent=5 // pred_check
        _
      $region10: #{tpu_custom_call.1} parent=5 // pred_check_branch
        %302 = sbr.rel (%p299) target = $region12
      $region11: #{tpu_custom_call.1} parent=5 // pred_region
        %s303 = ssub.s32 %s33, 1
        // Predicated region
        $region13: #{tpu_custom_call.1} parent=11 // pred_check
          %p304 = pneg %p170
        $region14: #{tpu_custom_call.1} parent=11 // pred_check_branch
          %306 = sbr.rel (%p304) target = $region16
        $region15: #{tpu_custom_call.1} parent=11 // pred_region
          %s308 = ssub.s32 256, 256
          %309 = vsyncadd [#allocation12], %s308
          %s310 = sshll.u32 [#allocation13], 4
          %s311 = int_to_ptr.vmem [resolvable:$true] %s310
          %316 = dma.hbm_to_vmem [thread:$0]  %s4, 256, %s311, [#allocation12], 64, 64, 4
        $region16: #{tpu_custom_call.1} parent=11 // pred_fallthru
          _
        // Predicated region
        $region17: #{tpu_custom_call.1} parent=11 // pred_check
          %p317 = pneg %p191
        $region18: #{tpu_custom_call.1} parent=11 // pred_check_branch
          %319 = sbr.rel (%p317) target = $region20
        $region19: #{tpu_custom_call.1} parent=11 // pred_region
          %s321 = ssub.s32 16, 16
          %322 = vsyncadd [#allocation15], %s321
          %s324 = sshll.u32 [#allocation14], 4
          %s325 = int_to_ptr.vmem [resolvable:$true] %s324
          %327 = dma.hbm_to_vmem [thread:$0]  %s5, 16, %s325, [#allocation15]
        $region20: #{tpu_custom_call.1} parent=11 // pred_fallthru
          _
        // Predicated region
        $region21: #{tpu_custom_call.1} parent=11 // pred_check
          %p328 = pneg %p212
        $region22: #{tpu_custom_call.1} parent=11 // pred_check_branch
          %330 = sbr.rel (%p328) target = $region24
        $region23: #{tpu_custom_call.1} parent=11 // pred_region
          %s332 = ssub.s32 256, 256
          %333 = vsyncadd [#allocation15], %s332
          %s334 = sshll.u32 [#allocation16], 4
          %s335 = int_to_ptr.vmem [resolvable:$true] %s334
          %340 = dma.hbm_to_vmem [thread:$0]  %s6, 256, %s335, [#allocation15], 64, 64, 4
        $region24: #{tpu_custom_call.1} parent=11 // pred_fallthru
          _
        // Predicated region
        $region25: #{tpu_custom_call.1} parent=11 // pred_check
          %p341 = pneg %p233
        $region26: #{tpu_custom_call.1} parent=11 // pred_check_branch
          %343 = sbr.rel (%p341) target = $region28
        $region27: #{tpu_custom_call.1} parent=11 // pred_region
          %s345 = ssub.s32 16, 16
          %346 = vsyncadd [#allocation18], %s345
          %s348 = sshll.u32 [#allocation17], 4
          %s349 = int_to_ptr.vmem [resolvable:$true] %s348
          %351 = dma.hbm_to_vmem [thread:$0]  %s7, 16, %s349, [#allocation18]
        $region28: #{tpu_custom_call.1} parent=11 // pred_fallthru
          _
      $region12: #{tpu_custom_call.1} parent=5 // pred_fallthru
        _
      %p352 = scmp.lt.s32.totalorder %s33, 2
      // Predicated region
      $region29: #{tpu_custom_call.1} parent=5 // pred_check
        %p353 = pneg %p352
      $region30: #{tpu_custom_call.1} parent=5 // pred_check_branch
        %355 = sbr.rel (%p353) target = $region32
      $region31: #{tpu_custom_call.1} parent=5 // pred_region
        // Predicated region
        $region33: #{tpu_custom_call.1} parent=31 // pred_check
          %p356 = pneg %p65
        $region34: #{tpu_custom_call.1} parent=31 // pred_check_branch
          %358 = sbr.rel (%p356) target = $region36
        $region35: #{tpu_custom_call.1} parent=31 // pred_region
          %s359 = sand.u32 %s55, 1
          %s360 = scalar_lea.sflag [#allocation6], %s359
          %s361 = sand.u32 %s55, 1
          %s362 = smul.addr %s361, 4
          %s363 = scalar_lea.vmem [#allocation5], %s362
          %s365 = ssub.s32 64, 64
          %366 = vsyncadd %s360, %s365
          %s367 = smul.addr %s40, 64
          %s368 = scalar_lea.hbm %s0, %s367
          %s370 = sshll.u32 %s363, 4
          %s371 = int_to_ptr.vmem [resolvable:$true] %s370
          %373 = dma.hbm_to_vmem [thread:$0]  %s368, 64, %s371, %s360
        $region36: #{tpu_custom_call.1} parent=31 // pred_fallthru
          _
        // Predicated region
        $region37: #{tpu_custom_call.1} parent=31 // pred_check
          %p374 = pneg %p91
        $region38: #{tpu_custom_call.1} parent=31 // pred_check_branch
          %376 = sbr.rel (%p374) target = $region40
        $region39: #{tpu_custom_call.1} parent=31 // pred_region
          %s377 = sand.u32 %s33, 1
          %s378 = scalar_lea.sflag [#allocation9], %s377
          %s379 = sand.u32 %s81, 1
          %s380 = smul.addr %s379, 4
          %s381 = scalar_lea.vmem [#allocation8], %s380
          %s383 = ssub.s32 64, 64
          %384 = vsyncadd %s378, %s383
          %s385 = smul.addr %s40, 64
          %s386 = scalar_lea.hbm %s1, %s385
          %s388 = sshll.u32 %s381, 4
          %s389 = int_to_ptr.vmem [resolvable:$true] %s388
          %391 = dma.hbm_to_vmem [thread:$0]  %s386, 64, %s389, %s378
        $region40: #{tpu_custom_call.1} parent=31 // pred_fallthru
          _
        // Predicated region
        $region41: #{tpu_custom_call.1} parent=31 // pred_check
          %p392 = pneg %p117
        $region42: #{tpu_custom_call.1} parent=31 // pred_check_branch
          %394 = sbr.rel (%p392) target = $region44
        $region43: #{tpu_custom_call.1} parent=31 // pred_region
          %s395 = sand.u32 %s33, 1
          %s396 = scalar_lea.sflag [#allocation9], %s395
          %s397 = sand.u32 %s107, 1
          %s398 = smul.addr %s397, 4
          %s399 = scalar_lea.vmem [#allocation10], %s398
          %s401 = ssub.s32 64, 64
          %402 = vsyncadd %s396, %s401
          %s403 = smul.addr %s40, 64
          %s404 = scalar_lea.hbm %s2, %s403
          %s406 = sshll.u32 %s399, 4
          %s407 = int_to_ptr.vmem [resolvable:$true] %s406
          %409 = dma.hbm_to_vmem [thread:$0]  %s404, 64, %s407, %s396
        $region44: #{tpu_custom_call.1} parent=31 // pred_fallthru
          _
        // Predicated region
        $region45: #{tpu_custom_call.1} parent=31 // pred_check
          %p410 = pneg %p143
        $region46: #{tpu_custom_call.1} parent=31 // pred_check_branch
          %412 = sbr.rel (%p410) target = $region48
        $region47: #{tpu_custom_call.1} parent=31 // pred_region
          %s413 = sand.u32 %s33, 1
          %s414 = scalar_lea.sflag [#allocation12], %s413
          %s415 = sand.u32 %s133, 1
          %s416 = scalar_lea.vmem [#allocation11], %s415
          %s418 = ssub.s32 16, 16
          %419 = vsyncadd %s414, %s418
          %s420 = smul.addr %s40, 16
          %s421 = scalar_lea.hbm %s3, %s420
          %s423 = sshll.u32 %s416, 4
          %s424 = int_to_ptr.vmem [resolvable:$true] %s423
          %426 = dma.hbm_to_vmem [thread:$0]  %s421, 16, %s424, %s414
        $region48: #{tpu_custom_call.1} parent=31 // pred_fallthru
          _
      $region32: #{tpu_custom_call.1} parent=5 // pred_fallthru
        _
      %p427 = scmp.le.s32.totalorder 1, %s33
      %p428 = scmp.lt.s32.totalorder %s33, 3
      %p429 = pnand %p427, %p428
      %p430 = pneg %p429
      // Predicated region
      $region49: #{tpu_custom_call.1} parent=5 // pred_check
        _
      $region50: #{tpu_custom_call.1} parent=5 // pred_check_branch
        %432 = sbr.rel (%p429) target = $region52
      $region51: #{tpu_custom_call.1} parent=5 // pred_region
        %s433 = ssub.s32 %s33, 1
        %s434 = sand.u32 %s58, 1
        %s435 = scalar_lea.sflag [#allocation6], %s434
        %s436 = sand.u32 %s58, 1
        %s437 = smul.addr %s436, 4
        %s438 = scalar_lea.vmem [#allocation5], %s437
        // Predicated region
        $region53: #{tpu_custom_call.1} parent=51 // pred_check
          %p439 = pneg %p71
        $region54: #{tpu_custom_call.1} parent=51 // pred_check_branch
          %441 = sbr.rel (%p439) target = $region56
        $region55: #{tpu_custom_call.1} parent=51 // pred_region
          %442 = dma.done %s435, 64
        $region56: #{tpu_custom_call.1} parent=51 // pred_fallthru
          _
        %s443 = sand.u32 %s38, 1
        %s444 = scalar_lea.sflag [#allocation9], %s443
        %s445 = sand.u32 %s84, 1
        %s446 = smul.addr %s445, 4
        %s447 = scalar_lea.vmem [#allocation8], %s446
        // Predicated region
        $region57: #{tpu_custom_call.1} parent=51 // pred_check
          %p448 = pneg %p97
        $region58: #{tpu_custom_call.1} parent=51 // pred_check_branch
          %450 = sbr.rel (%p448) target = $region60
        $region59: #{tpu_custom_call.1} parent=51 // pred_region
          %451 = dma.done %s444, 64
        $region60: #{tpu_custom_call.1} parent=51 // pred_fallthru
          _
        %s452 = sand.u32 %s38, 1
        %s453 = scalar_lea.sflag [#allocation9], %s452
        %s454 = sand.u32 %s110, 1
        %s455 = smul.addr %s454, 4
        %s456 = scalar_lea.vmem [#allocation10], %s455
        // Predicated region
        $region61: #{tpu_custom_call.1} parent=51 // pred_check
          %p457 = pneg %p123
        $region62: #{tpu_custom_call.1} parent=51 // pred_check_branch
          %459 = sbr.rel (%p457) target = $region64
        $region63: #{tpu_custom_call.1} parent=51 // pred_region
          %460 = dma.done %s453, 64
        $region64: #{tpu_custom_call.1} parent=51 // pred_fallthru
          _
        %s461 = sand.u32 %s38, 1
        %s462 = scalar_lea.sflag [#allocation12], %s461
        %s463 = sand.u32 %s136, 1
        %s464 = scalar_lea.vmem [#allocation11], %s463
        // Predicated region
        $region65: #{tpu_custom_call.1} parent=51 // pred_check
          %p465 = pneg %p149
        $region66: #{tpu_custom_call.1} parent=51 // pred_check_branch
          %467 = sbr.rel (%p465) target = $region68
        $region67: #{tpu_custom_call.1} parent=51 // pred_region
          %468 = dma.done %s462, 16
        $region68: #{tpu_custom_call.1} parent=51 // pred_fallthru
          _
        // Predicated region
        $region69: #{tpu_custom_call.1} parent=51 // pred_check
          %p469 = pneg %p170
        $region70: #{tpu_custom_call.1} parent=51 // pred_check_branch
          %471 = sbr.rel (%p469) target = $region72
        $region71: #{tpu_custom_call.1} parent=51 // pred_region
          %472 = dma.done [#allocation12], 256
        $region72: #{tpu_custom_call.1} parent=51 // pred_fallthru
          _
        // Predicated region
        $region73: #{tpu_custom_call.1} parent=51 // pred_check
          %p473 = pneg %p191
        $region74: #{tpu_custom_call.1} parent=51 // pred_check_branch
          %475 = sbr.rel (%p473) target = $region76
        $region75: #{tpu_custom_call.1} parent=51 // pred_region
          %476 = dma.done [#allocation15], 16
        $region76: #{tpu_custom_call.1} parent=51 // pred_fallthru
          _
        // Predicated region
        $region77: #{tpu_custom_call.1} parent=51 // pred_check
          %p477 = pneg %p212
        $region78: #{tpu_custom_call.1} parent=51 // pred_check_branch
          %479 = sbr.rel (%p477) target = $region80
        $region79: #{tpu_custom_call.1} parent=51 // pred_region
          %480 = dma.done [#allocation15], 256
        $region80: #{tpu_custom_call.1} parent=51 // pred_fallthru
          _
        // Predicated region
        $region81: #{tpu_custom_call.1} parent=51 // pred_check
          %p481 = pneg %p233
        $region82: #{tpu_custom_call.1} parent=51 // pred_check_branch
          %483 = sbr.rel (%p481) target = $region84
        $region83: #{tpu_custom_call.1} parent=51 // pred_region
          %484 = dma.done [#allocation18], 16
        $region84: #{tpu_custom_call.1} parent=51 // pred_fallthru
          _
        %s485 = sand.u32 %s58, 1
        %s486 = scalar_lea.sflag [#allocation6], %s485
        %s487 = sand.u32 %s58, 1
        %s488 = smul.addr %s487, 4
        %s489 = scalar_lea.vmem [#allocation5], %s488
        %p490 = pneg %p71
        %p491 = pneg %p68
        %s492 = sand.u32 %s38, 1
        %s493 = scalar_lea.sflag [#allocation9], %s492
        %s494 = sand.u32 %s84, 1
        %s495 = smul.addr %s494, 4
        %s496 = scalar_lea.vmem [#allocation8], %s495
        %p497 = pneg %p97
        %p498 = pneg %p94
        %s499 = sand.u32 %s38, 1
        %s500 = scalar_lea.sflag [#allocation9], %s499
        %s501 = sand.u32 %s110, 1
        %s502 = smul.addr %s501, 4
        %s503 = scalar_lea.vmem [#allocation10], %s502
        %p504 = pneg %p123
        %p505 = pneg %p120
        %s506 = sand.u32 %s38, 1
        %s507 = scalar_lea.sflag [#allocation12], %s506
        %s508 = sand.u32 %s136, 1
        %s509 = scalar_lea.vmem [#allocation11], %s508
        %p510 = pneg %p149
        %p511 = pneg %p146
        %p512 = pneg %p170
        %p513 = pneg %p167
        %p514 = pneg %p191
        %p515 = pneg %p188
        %p516 = pneg %p212
        %p517 = pneg %p209
        %p518 = pneg %p233
        %p519 = pneg %p230
        %p520 = pneg %p261
        %p521 = pneg %p258
        %s522 = sand.u32 %s248, 1
        %s523 = scalar_lea.sflag [#allocation7], %s522
        %s524 = sand.u32 %s248, 1
        %s525 = smul.addr %s524, 8
        %s526 = scalar_lea.vmem [#allocation19], %s525
        %p527 = pneg %p289
        %p528 = pneg %p286
        %s529 = sand.u32 %s276, 1
        %s530 = scalar_lea.sflag [#allocation21], %s529
        %s531 = sand.u32 %s276, 1
        %s532 = smul.addr %s531, 32
        %s533 = scalar_lea.vmem [#allocation20], %s532
        %p535 = scmp.eq.s32.totalorder %s43, 0
        // Predicated region
        $region85: #{tpu_custom_call.1} parent=51 // pred_check
          %p536 = pneg %p535
        $region86: #{tpu_custom_call.1} parent=51 // pred_check_branch
          %538 = sbr.rel (%p536) target = $region88
        $region87: #{tpu_custom_call.1} parent=51 // pred_region
          %v539 = vld [vmem:[%s438] sm:$0xf]
          %v540 = vld [vmem:[#allocation13] sm:$0xf]
          %v541 = vld [vmem:[#allocation13 + $0x4] sm:$0xf]
          %v542 = vld [vmem:[#allocation13 + $0x8] sm:$0xf]
          %v543 = vld [vmem:[#allocation13 + $0xc] sm:$0xf]
          %v544 = vld [vmem:[#allocation14] sm:$0x1]
          %v546 = vlaneseq
          %v547 = vshrl.u32 %v546, 7
          %v548 = vsub.s32 0, %v547
          %v549 = vrot.slane %v544, %v548
          %v555 = vunpack.c.l.b16 %v540
          %v556 = vunpack.c.l.b16 %v541
          %v557 = vunpack.c.l.b16 %v542
          %v558 = vunpack.c.l.b16 %v543
          %v559 = vpack.c.b16 %v556, %v555
          %v560 = vpack.c.b16 %v558, %v557
          %vm563 = vcmask 261120
          %v565 = vsel %vm563, %v539, 0
          %567 = vmatprep.subr.bf16.mxu0 0
          %568 = vmatpush1.bf16.msra.mxu0 %v559
          %569 = vmatprep.subr.bf16.mxu0 0
          %570 = vmatpush1.bf16.msra.mxu0 %v560
          %571 = vmatprep.subr.bf16.mxu0 0
          %572 = vmatpush1.bf16.msra.mxu0 0
          %573 = vmatprep.subr.bf16.mxu0 0
          %574 = vmatpush1.bf16.msra.mxu0 0
          %575 = vmatprep.subr.bf16.mxu0 0
          %576 = vmatpush1.bf16.msra.mxu0 0
          %577 = vmatprep.subr.bf16.mxu0 0
          %578 = vmatpush1.bf16.msra.mxu0 0
          %579 = vmatprep.subr.bf16.mxu0 0
          %580 = vmatpush1.bf16.msra.mxu0 0
          %581 = vmatprep.subr.bf16.mxu0 0
          %582 = vmatpush1.bf16.msra.mxu0 0
          %583 = vmatprep.subr.bf16.mxu0 0
          %584 = vmatpush1.bf16.msra.mxu0 0
          %585 = vmatprep.subr.bf16.mxu0 0
          %586 = vmatpush1.bf16.msra.mxu0 0
          %587 = vmatprep.subr.bf16.mxu0 0
          %588 = vmatpush1.bf16.msra.mxu0 0
          %589 = vmatprep.subr.bf16.mxu0 0
          %590 = vmatpush1.bf16.msra.mxu0 0
          %591 = vmatprep.subr.bf16.mxu0 0
          %592 = vmatpush1.bf16.msra.mxu0 0
          %593 = vmatprep.subr.bf16.mxu0 0
          %594 = vmatpush1.bf16.msra.mxu0 0
          %595 = vmatprep.subr.bf16.mxu0 0
          %596 = vmatpush1.bf16.msra.mxu0 0
          %597 = vmatprep.subr.bf16.mxu0 0
          %598 = vmatpush1.bf16.msra.mxu0 0
          %599 = vmatprep.mubr.bf16.mxu0 0
          %600 = vmatmul.mubr.bf16.gmra.mrb[0].mxu0 %v565
          %v601 = vpop.f32.mrb[0].mxu0
          %v602 = vadd.f32 %v549, %v601
          %v603 = vpop.f32.mrb[0].mxu0
          %v604 = vpop.f32.mrb[0].mxu0
          %v605 = vpop.f32.mrb[0].mxu0
          %606 = vdwg.mxu0
          %v607 = vmul.f32 %v602, 0.35355338
          %v608 = vld [vmem:[%s447] sm:$0xf]
          %609 = vrot.lane.b32.xlu0 %v559, 96
          %v610 = vpop.permute.xlu0 %609
          %611 = vrot.lane.b32.xlu0 %v560, 96
          %v612 = vpop.permute.xlu0 %611
          %615 = vrot.lane.b32.xlu0 %v549, 96
          %v616 = vpop.permute.xlu0 %615
          %v619 = vsel %vm563, %v608, 0
          %621 = vmatprep.subr.bf16.mxu0 0
          %622 = vmatpush1.bf16.msra.mxu0 %v610
          %623 = vmatprep.subr.bf16.mxu0 0
          %624 = vmatpush1.bf16.msra.mxu0 %v612
          %625 = vmatprep.subr.bf16.mxu0 0
          %626 = vmatpush1.bf16.msra.mxu0 0
          %627 = vmatprep.subr.bf16.mxu0 0
          %628 = vmatpush1.bf16.msra.mxu0 0
          %629 = vmatprep.subr.bf16.mxu0 0
          %630 = vmatpush1.bf16.msra.mxu0 0
          %631 = vmatprep.subr.bf16.mxu0 0
          %632 = vmatpush1.bf16.msra.mxu0 0
          %633 = vmatprep.subr.bf16.mxu0 0
          %634 = vmatpush1.bf16.msra.mxu0 0
          %635 = vmatprep.subr.bf16.mxu0 0
          %636 = vmatpush1.bf16.msra.mxu0 0
          %637 = vmatprep.subr.bf16.mxu0 0
          %638 = vmatpush1.bf16.msra.mxu0 0
          %639 = vmatprep.subr.bf16.mxu0 0
          %640 = vmatpush1.bf16.msra.mxu0 0
          %641 = vmatprep.subr.bf16.mxu0 0
          %642 = vmatpush1.bf16.msra.mxu0 0
          %643 = vmatprep.subr.bf16.mxu0 0
          %644 = vmatpush1.bf16.msra.mxu0 0
          %645 = vmatprep.subr.bf16.mxu0 0
          %646 = vmatpush1.bf16.msra.mxu0 0
          %647 = vmatprep.subr.bf16.mxu0 0
          %648 = vmatpush1.bf16.msra.mxu0 0
          %649 = vmatprep.subr.bf16.mxu0 0
          %650 = vmatpush1.bf16.msra.mxu0 0
          %651 = vmatprep.subr.bf16.mxu0 0
          %652 = vmatpush1.bf16.msra.mxu0 0
          %653 = vmatprep.mubr.bf16.mxu0 0
          %654 = vmatmul.mubr.bf16.gmra.mrb[0].mxu0 %v619
          %v655 = vpop.f32.mrb[0].mxu0
          %v656 = vadd.f32 %v616, %v655
          %v657 = vpop.f32.mrb[0].mxu0
          %v658 = vpop.f32.mrb[0].mxu0
          %v659 = vpop.f32.mrb[0].mxu0
          %660 = vdwg.mxu0
          %v661 = vld [vmem:[%s456] sm:$0xf]
          %662 = vrot.lane.b32.xlu0 %v559, 64
          %v663 = vpop.permute.xlu0 %662
          %664 = vrot.lane.b32.xlu0 %v560, 64
          %v665 = vpop.permute.xlu0 %664
          %668 = vrot.lane.b32.xlu0 %v549, 64
          %v669 = vpop.permute.xlu0 %668
          %v672 = vsel %vm563, %v661, 0
          %674 = vmatprep.subr.bf16.mxu0 0
          %675 = vmatpush1.bf16.msra.mxu0 %v663
          %676 = vmatprep.subr.bf16.mxu0 0
          %677 = vmatpush1.bf16.msra.mxu0 %v665
          %678 = vmatprep.subr.bf16.mxu0 0
          %679 = vmatpush1.bf16.msra.mxu0 0
          %680 = vmatprep.subr.bf16.mxu0 0
          %681 = vmatpush1.bf16.msra.mxu0 0
          %682 = vmatprep.subr.bf16.mxu0 0
          %683 = vmatpush1.bf16.msra.mxu0 0
          %684 = vmatprep.subr.bf16.mxu0 0
          %685 = vmatpush1.bf16.msra.mxu0 0
          %686 = vmatprep.subr.bf16.mxu0 0
          %687 = vmatpush1.bf16.msra.mxu0 0
          %688 = vmatprep.subr.bf16.mxu0 0
          %689 = vmatpush1.bf16.msra.mxu0 0
          %690 = vmatprep.subr.bf16.mxu0 0
          %691 = vmatpush1.bf16.msra.mxu0 0
          %692 = vmatprep.subr.bf16.mxu0 0
          %693 = vmatpush1.bf16.msra.mxu0 0
          %694 = vmatprep.subr.bf16.mxu0 0
          %695 = vmatpush1.bf16.msra.mxu0 0
          %696 = vmatprep.subr.bf16.mxu0 0
          %697 = vmatpush1.bf16.msra.mxu0 0
          %698 = vmatprep.subr.bf16.mxu0 0
          %699 = vmatpush1.bf16.msra.mxu0 0
          %700 = vmatprep.subr.bf16.mxu0 0
          %701 = vmatpush1.bf16.msra.mxu0 0
          %702 = vmatprep.subr.bf16.mxu0 0
          %703 = vmatpush1.bf16.msra.mxu0 0
          %704 = vmatprep.subr.bf16.mxu0 0
          %705 = vmatpush1.bf16.msra.mxu0 0
          %706 = vmatprep.mubr.bf16.mxu0 0
          %707 = vmatmul.mubr.bf16.gmra.mrb[0].mxu0 %v672
          %v708 = vpop.f32.mrb[0].mxu0
          %v709 = vadd.f32 %v669, %v708
          %v710 = vpop.f32.mrb[0].mxu0
          %v711 = vpop.f32.mrb[0].mxu0
          %v712 = vpop.f32.mrb[0].mxu0
          %713 = vdwg.mxu0
          %v714 = vpack.c.bf16 %v607, %v607
          %v715 = vpack.c.bf16 %v656, %v656
          %v716 = vpack.c.bf16 %v709, %v709
          %vm717 = vcmask 60416
          %718 = vst.msk [vmem:[#allocation3] sm:$0xf] %vm717, %v715
          %719 = vst.msk [vmem:[#allocation4] sm:$0xf] %vm717, %v716
          %720 = vst.msk [vmem:[#allocation2] sm:$0xf] %vm717, %v714
          %v722 = vunpack.c.l.b16 %v715
          %v723 = vpack.c.b16 %v722, %v722
          %724 = vrot.lane.b32.xlu0 %v723, 120
          %v725 = vpop.permute.xlu0 %724
          %s727 = scalar_lea.vmem [#allocation3], 4
          %728 = vst.msk [vmem:[%s727] sm:$0xf] %vm717, %v725
          %v730 = vunpack.c.l.b16 %v716
          %v731 = vpack.c.b16 %v730, %v730
          %732 = vrot.lane.b32.xlu0 %v731, 120
          %v733 = vpop.permute.xlu0 %732
          %s735 = scalar_lea.vmem [#allocation4], 4
          %736 = vst.msk [vmem:[%s735] sm:$0xf] %vm717, %v733
          %v738 = vunpack.c.l.b16 %v714
          %v739 = vpack.c.b16 %v738, %v738
          %740 = vrot.lane.b32.xlu0 %v739, 120
          %v741 = vpop.permute.xlu0 %740
          %s743 = scalar_lea.vmem [#allocation2], 4
          %744 = vst.msk [vmem:[%s743] sm:$0xf] %vm717, %v741
          %745 = vrot.lane.b32.xlu0 %v723, 112
          %v746 = vpop.permute.xlu0 %745
          %s748 = scalar_lea.vmem [#allocation3], 8
          %749 = vst.msk [vmem:[%s748] sm:$0xf] %vm717, %v746
          %750 = vrot.lane.b32.xlu0 %v731, 112
          %v751 = vpop.permute.xlu0 %750
          %s753 = scalar_lea.vmem [#allocation4], 8
          %754 = vst.msk [vmem:[%s753] sm:$0xf] %vm717, %v751
          %755 = vrot.lane.b32.xlu0 %v739, 112
          %v756 = vpop.permute.xlu0 %755
          %s758 = scalar_lea.vmem [#allocation2], 8
          %759 = vst.msk [vmem:[%s758] sm:$0xf] %vm717, %v756
          %760 = vrot.lane.b32.xlu0 %v723, 104
          %v761 = vpop.permute.xlu0 %760
          %s763 = scalar_lea.vmem [#allocation3], 12
          %764 = vst.msk [vmem:[%s763] sm:$0xf] %vm717, %v761
          %765 = vrot.lane.b32.xlu0 %v731, 104
          %v766 = vpop.permute.xlu0 %765
          %s768 = scalar_lea.vmem [#allocation4], 12
          %769 = vst.msk [vmem:[%s768] sm:$0xf] %vm717, %v766
          %770 = vrot.lane.b32.xlu0 %v739, 104
          %v771 = vpop.permute.xlu0 %770
          %s773 = scalar_lea.vmem [#allocation2], 12
          %774 = vst.msk [vmem:[%s773] sm:$0xf] %vm717, %v771
        $region88: #{tpu_custom_call.1} parent=51 // pred_fallthru
          _
        %s775 = smul.u32 %s43, 4
        %s776 = smul.addr %s775, 4
        %s777 = scalar_lea.vmem [#allocation2], %s776
        %v778 = vld [vmem:[%s777] sm:$0xf]
        %v779 = vld [vmem:[%s777 + $0x4] sm:$0xf]
        %v780 = vld [vmem:[%s777 + $0x8] sm:$0xf]
        %v781 = vld [vmem:[%s777 + $0xc] sm:$0xf]
        %v782 = vld [vmem:[#allocation3] sm:$0xf]
        %v783 = vld [vmem:[#allocation3 + $0x4] sm:$0xf]
        %v784 = vld [vmem:[#allocation3 + $0x8] sm:$0xf]
        %v785 = vld [vmem:[#allocation3 + $0xc] sm:$0xf]
        %v786 = vld [vmem:[#allocation4] sm:$0xf]
        %v787 = vld [vmem:[#allocation4 + $0x4] sm:$0xf]
        %v788 = vld [vmem:[#allocation4 + $0x8] sm:$0xf]
        %v789 = vld [vmem:[#allocation4 + $0xc] sm:$0xf]
        %v790 = vld [vmem:[%s464] sm:$0x1]
        %v792 = vlaneseq
        %v793 = vshrl.u32 %v792, 7
        %v794 = vsub.s32 0, %v793
        %v795 = vrot.slane %v790, %v794
        %vm797 = vcmask 64512
        %v799 = vsel %vm797, %v778, 0
        %v802 = vsel %vm797, %v782, 0
        %804 = vmatprep.subr.bf16.mxu0 0
        %805 = vmatpush1.bf16.xpose.msra.mxu0 %v802
        %806 = vmatprep.subr.bf16.mxu0 0
        %807 = vmatpush1.bf16.xpose.msra.mxu0 0
        %808 = vmatprep.subr.bf16.mxu0 0
        %809 = vmatpush1.bf16.xpose.msra.mxu0 0
        %810 = vmatprep.subr.bf16.mxu0 0
        %811 = vmatpush1.bf16.xpose.msra.mxu0 0
        %812 = vmatprep.subr.bf16.mxu0 0
        %813 = vmatpush1.bf16.xpose.msra.mxu0 0
        %814 = vmatprep.subr.bf16.mxu0 0
        %815 = vmatpush1.bf16.xpose.msra.mxu0 0
        %816 = vmatprep.subr.bf16.mxu0 0
        %817 = vmatpush1.bf16.xpose.msra.mxu0 0
        %818 = vmatprep.subr.bf16.mxu0 0
        %819 = vmatpush1.bf16.xpose.msra.mxu0 0
        %820 = vmatprep.subr.bf16.mxu0 0
        %821 = vmatpush1.bf16.xpose.msra.mxu0 0
        %822 = vmatprep.subr.bf16.mxu0 0
        %823 = vmatpush1.bf16.xpose.msra.mxu0 0
        %824 = vmatprep.subr.bf16.mxu0 0
        %825 = vmatpush1.bf16.xpose.msra.mxu0 0
        %826 = vmatprep.subr.bf16.mxu0 0
        %827 = vmatpush1.bf16.xpose.msra.mxu0 0
        %828 = vmatprep.subr.bf16.mxu0 0
        %829 = vmatpush1.bf16.xpose.msra.mxu0 0
        %830 = vmatprep.subr.bf16.mxu0 0
        %831 = vmatpush1.bf16.xpose.msra.mxu0 0
        %832 = vmatprep.subr.bf16.mxu0 0
        %833 = vmatpush1.bf16.xpose.msra.mxu0 0
        %834 = vmatprep.subr.bf16.mxu0 0
        %835 = vmatpush1.bf16.xpose.msra.mxu0 0
        %836 = vmatprep.mubr.bf16.mxu0 0
        %837 = vmatmul.mubr.bf16.gmra.mrb[0].mxu0 %v799
        %v838 = vpop.f32.mrb[0].mxu0
        %v839 = vadd.f32 %v795, %v838
        %v840 = vpop.f32.mrb[0].mxu0
        %v841 = vpop.f32.mrb[0].mxu0
        %v842 = vpop.f32.mrb[0].mxu0
        %843 = vdwg.mxu0
        %v845 = vsel %vm797, %v779, 0
        %v848 = vsel %vm797, %v783, 0
        %850 = vmatprep.subr.bf16.mxu0 0
        %851 = vmatpush1.bf16.xpose.msra.mxu0 %v848
        %852 = vmatprep.subr.bf16.mxu0 0
        %853 = vmatpush1.bf16.xpose.msra.mxu0 0
        %854 = vmatprep.subr.bf16.mxu0 0
        %855 = vmatpush1.bf16.xpose.msra.mxu0 0
        %856 = vmatprep.subr.bf16.mxu0 0
        %857 = vmatpush1.bf16.xpose.msra.mxu0 0
        %858 = vmatprep.subr.bf16.mxu0 0
        %859 = vmatpush1.bf16.xpose.msra.mxu0 0
        %860 = vmatprep.subr.bf16.mxu0 0
        %861 = vmatpush1.bf16.xpose.msra.mxu0 0
        %862 = vmatprep.subr.bf16.mxu0 0
        %863 = vmatpush1.bf16.xpose.msra.mxu0 0
        %864 = vmatprep.subr.bf16.mxu0 0
        %865 = vmatpush1.bf16.xpose.msra.mxu0 0
        %866 = vmatprep.subr.bf16.mxu0 0
        %867 = vmatpush1.bf16.xpose.msra.mxu0 0
        %868 = vmatprep.subr.bf16.mxu0 0
        %869 = vmatpush1.bf16.xpose.msra.mxu0 0
        %870 = vmatprep.subr.bf16.mxu0 0
        %871 = vmatpush1.bf16.xpose.msra.mxu0 0
        %872 = vmatprep.subr.bf16.mxu0 0
        %873 = vmatpush1.bf16.xpose.msra.mxu0 0
        %874 = vmatprep.subr.bf16.mxu0 0
        %875 = vmatpush1.bf16.xpose.msra.mxu0 0
        %876 = vmatprep.subr.bf16.mxu0 0
        %877 = vmatpush1.bf16.xpose.msra.mxu0 0
        %878 = vmatprep.subr.bf16.mxu0 0
        %879 = vmatpush1.bf16.xpose.msra.mxu0 0
        %880 = vmatprep.subr.bf16.mxu0 0
        %881 = vmatpush1.bf16.xpose.msra.mxu0 0
        %882 = vmatprep.mubr.bf16.mxu0 0
        %883 = vmatmul.mubr.bf16.gmra.mrb[0].mxu0 %v845
        %v884 = vpop.f32.mrb[0].mxu0
        %v885 = vadd.f32 %v795, %v884
        %v886 = vpop.f32.mrb[0].mxu0
        %v887 = vpop.f32.mrb[0].mxu0
        %v888 = vpop.f32.mrb[0].mxu0
        %889 = vdwg.mxu0
        %v891 = vsel %vm797, %v780, 0
        %v894 = vsel %vm797, %v784, 0
        %896 = vmatprep.subr.bf16.mxu0 0
        %897 = vmatpush1.bf16.xpose.msra.mxu0 %v894
        %898 = vmatprep.subr.bf16.mxu0 0
        %899 = vmatpush1.bf16.xpose.msra.mxu0 0
        %900 = vmatprep.subr.bf16.mxu0 0
        %901 = vmatpush1.bf16.xpose.msra.mxu0 0
        %902 = vmatprep.subr.bf16.mxu0 0
        %903 = vmatpush1.bf16.xpose.msra.mxu0 0
        %904 = vmatprep.subr.bf16.mxu0 0
        %905 = vmatpush1.bf16.xpose.msra.mxu0 0
        %906 = vmatprep.subr.bf16.mxu0 0
        %907 = vmatpush1.bf16.xpose.msra.mxu0 0
        %908 = vmatprep.subr.bf16.mxu0 0
        %909 = vmatpush1.bf16.xpose.msra.mxu0 0
        %910 = vmatprep.subr.bf16.mxu0 0
        %911 = vmatpush1.bf16.xpose.msra.mxu0 0
        %912 = vmatprep.subr.bf16.mxu0 0
        %913 = vmatpush1.bf16.xpose.msra.mxu0 0
        %914 = vmatprep.subr.bf16.mxu0 0
        %915 = vmatpush1.bf16.xpose.msra.mxu0 0
        %916 = vmatprep.subr.bf16.mxu0 0
        %917 = vmatpush1.bf16.xpose.msra.mxu0 0
        %918 = vmatprep.subr.bf16.mxu0 0
        %919 = vmatpush1.bf16.xpose.msra.mxu0 0
        %920 = vmatprep.subr.bf16.mxu0 0
        %921 = vmatpush1.bf16.xpose.msra.mxu0 0
        %922 = vmatprep.subr.bf16.mxu0 0
        %923 = vmatpush1.bf16.xpose.msra.mxu0 0
        %924 = vmatprep.subr.bf16.mxu0 0
        %925 = vmatpush1.bf16.xpose.msra.mxu0 0
        %926 = vmatprep.subr.bf16.mxu0 0
        %927 = vmatpush1.bf16.xpose.msra.mxu0 0
        %928 = vmatprep.mubr.bf16.mxu0 0
        %929 = vmatmul.mubr.bf16.gmra.mrb[0].mxu0 %v891
        %v930 = vpop.f32.mrb[0].mxu0
        %v931 = vadd.f32 %v795, %v930
        %v932 = vpop.f32.mrb[0].mxu0
        %v933 = vpop.f32.mrb[0].mxu0
        %v934 = vpop.f32.mrb[0].mxu0
        %935 = vdwg.mxu0
        %v937 = vsel %vm797, %v781, 0
        %v940 = vsel %vm797, %v785, 0
        %942 = vmatprep.subr.bf16.mxu0 0
        %943 = vmatpush1.bf16.xpose.msra.mxu0 %v940
        %944 = vmatprep.subr.bf16.mxu0 0
        %945 = vmatpush1.bf16.xpose.msra.mxu0 0
        %946 = vmatprep.subr.bf16.mxu0 0
        %947 = vmatpush1.bf16.xpose.msra.mxu0 0
        %948 = vmatprep.subr.bf16.mxu0 0
        %949 = vmatpush1.bf16.xpose.msra.mxu0 0
        %950 = vmatprep.subr.bf16.mxu0 0
        %951 = vmatpush1.bf16.xpose.msra.mxu0 0
        %952 = vmatprep.subr.bf16.mxu0 0
        %953 = vmatpush1.bf16.xpose.msra.mxu0 0
        %954 = vmatprep.subr.bf16.mxu0 0
        %955 = vmatpush1.bf16.xpose.msra.mxu0 0
        %956 = vmatprep.subr.bf16.mxu0 0
        %957 = vmatpush1.bf16.xpose.msra.mxu0 0
        %958 = vmatprep.subr.bf16.mxu0 0
        %959 = vmatpush1.bf16.xpose.msra.mxu0 0
        %960 = vmatprep.subr.bf16.mxu0 0
        %961 = vmatpush1.bf16.xpose.msra.mxu0 0
        %962 = vmatprep.subr.bf16.mxu0 0
        %963 = vmatpush1.bf16.xpose.msra.mxu0 0
        %964 = vmatprep.subr.bf16.mxu0 0
        %965 = vmatpush1.bf16.xpose.msra.mxu0 0
        %966 = vmatprep.subr.bf16.mxu0 0
        %967 = vmatpush1.bf16.xpose.msra.mxu0 0
        %968 = vmatprep.subr.bf16.mxu0 0
        %969 = vmatpush1.bf16.xpose.msra.mxu0 0
        %970 = vmatprep.subr.bf16.mxu0 0
        %971 = vmatpush1.bf16.xpose.msra.mxu0 0
        %972 = vmatprep.subr.bf16.mxu0 0
        %973 = vmatpush1.bf16.xpose.msra.mxu0 0
        %974 = vmatprep.mubr.bf16.mxu0 0
        %975 = vmatmul.mubr.bf16.gmra.mrb[0].mxu0 %v937
        %v976 = vpop.f32.mrb[0].mxu0
        %v977 = vadd.f32 %v795, %v976
        %v978 = vpop.f32.mrb[0].mxu0
        %v979 = vpop.f32.mrb[0].mxu0
        %v980 = vpop.f32.mrb[0].mxu0
        %981 = vdwg.mxu0
        %v982 = vsel %vm797, %v839, -inf
        %983 = vmax.xlane.f32.xlu0 %v982
        %v984 = vpop.xlane.xlu0 %983
        %v985 = vsel %vm797, %v885, -inf
        %986 = vmax.xlane.f32.xlu0 %v985
        %v987 = vpop.xlane.xlu0 %986
        %v988 = vsel %vm797, %v931, -inf
        %989 = vmax.xlane.f32.xlu0 %v988
        %v990 = vpop.xlane.xlu0 %989
        %v991 = vsel %vm797, %v977, -inf
        %992 = vmax.xlane.f32.xlu0 %v991
        %v993 = vpop.xlane.xlu0 %992
        %v994 = vsub.f32 %v839, %v984
        %v995 = vsub.f32 %v885, %v987
        %v996 = vsub.f32 %v931, %v990
        %v997 = vsub.f32 %v977, %v993
        %v998 = vmul.f32 %v994, 1.442695
        %v999 = vpow.pop %v998
        %v1000 = vmul.f32 %v995, 1.442695
        %v1001 = vpow.pop %v1000
        %v1002 = vmul.f32 %v996, 1.442695
        %v1003 = vpow.pop %v1002
        %v1004 = vmul.f32 %v997, 1.442695
        %v1005 = vpow.pop %v1004
        %v1006 = vsel %vm797, %v999, 0.0
        %1007 = vadd.xlane.f32.xlu0 %v1006
        %v1008 = vpop.xlane.xlu0 %1007
        %v1009 = vsel %vm797, %v1001, 0.0
        %1010 = vadd.xlane.f32.xlu0 %v1009
        %v1011 = vpop.xlane.xlu0 %1010
        %v1012 = vsel %vm797, %v1003, 0.0
        %1013 = vadd.xlane.f32.xlu0 %v1012
        %v1014 = vpop.xlane.xlu0 %1013
        %v1015 = vsel %vm797, %v1005, 0.0
        %1016 = vadd.xlane.f32.xlu0 %v1015
        %v1017 = vpop.xlane.xlu0 %1016
        %v1018 = vrcp.pop %v1008
        %v1019 = vrcp.pop %v1011
        %v1020 = vrcp.pop %v1014
        %v1021 = vrcp.pop %v1017
        %v1022 = vmul.f32 %v999, %v1018
        %v1023 = vmul.f32 %v1001, %v1019
        %v1024 = vmul.f32 %v1003, %v1020
        %v1025 = vmul.f32 %v1005, %v1021
        %1026 = vst.msk [vmem:[%s533] sm:$0xff] %vm797, %v1022
        %1027 = vst.msk [vmem:[%s533 + $0x8] sm:$0xff] %vm797, %v1023
        %1028 = vst.msk [vmem:[%s533 + $0x10] sm:$0xff] %vm797, %v1024
        %1029 = vst.msk [vmem:[%s533 + $0x18] sm:$0xff] %vm797, %v1025
        %v1030 = vpack.c.bf16 %v1022, %v1022
        %v1031 = vpack.c.bf16 %v1023, %v1023
        %v1032 = vpack.c.bf16 %v1024, %v1024
        %v1033 = vpack.c.bf16 %v1025, %v1025
        %v1035 = vsel %vm797, %v1030, 0
        %vm1037 = vcmask 1043456
        %v1039 = vsel %vm1037, %v786, 0
        %1041 = vmatprep.subr.bf16.mxu0 0
        %1042 = vmatpush1.bf16.msra.mxu0 %v1039
        %1043 = vmatprep.subr.bf16.mxu0 0
        %1044 = vmatpush1.bf16.msra.mxu0 0
        %1045 = vmatprep.subr.bf16.mxu0 0
        %1046 = vmatpush1.bf16.msra.mxu0 0
        %1047 = vmatprep.subr.bf16.mxu0 0
        %1048 = vmatpush1.bf16.msra.mxu0 0
        %1049 = vmatprep.subr.bf16.mxu0 0
        %1050 = vmatpush1.bf16.msra.mxu0 0
        %1051 = vmatprep.subr.bf16.mxu0 0
        %1052 = vmatpush1.bf16.msra.mxu0 0
        %1053 = vmatprep.subr.bf16.mxu0 0
        %1054 = vmatpush1.bf16.msra.mxu0 0
        %1055 = vmatprep.subr.bf16.mxu0 0
        %1056 = vmatpush1.bf16.msra.mxu0 0
        %1057 = vmatprep.subr.bf16.mxu0 0
        %1058 = vmatpush1.bf16.msra.mxu0 0
        %1059 = vmatprep.subr.bf16.mxu0 0
        %1060 = vmatpush1.bf16.msra.mxu0 0
        %1061 = vmatprep.subr.bf16.mxu0 0
        %1062 = vmatpush1.bf16.msra.mxu0 0
        %1063 = vmatprep.subr.bf16.mxu0 0
        %1064 = vmatpush1.bf16.msra.mxu0 0
        %1065 = vmatprep.subr.bf16.mxu0 0
        %1066 = vmatpush1.bf16.msra.mxu0 0
        %1067 = vmatprep.subr.bf16.mxu0 0
        %1068 = vmatpush1.bf16.msra.mxu0 0
        %1069 = vmatprep.subr.bf16.mxu0 0
        %1070 = vmatpush1.bf16.msra.mxu0 0
        %1071 = vmatprep.subr.bf16.mxu0 0
        %1072 = vmatpush1.bf16.msra.mxu0 0
        %1073 = vmatprep.mubr.bf16.mxu0 0
        %1074 = vmatmul.mubr.bf16.gmra.mrb[0].mxu0 %v1035
        %v1075 = vpop.f32.mrb[0].mxu0
        %v1076 = vadd.f32 0.0, %v1075
        %v1077 = vpop.f32.mrb[0].mxu0
        %v1078 = vpop.f32.mrb[0].mxu0
        %v1079 = vpop.f32.mrb[0].mxu0
        %1080 = vdwg.mxu0
        %v1082 = vsel %vm797, %v1031, 0
        %v1085 = vsel %vm1037, %v787, 0
        %1087 = vmatprep.subr.bf16.mxu0 0
        %1088 = vmatpush1.bf16.msra.mxu0 %v1085
        %1089 = vmatprep.subr.bf16.mxu0 0
        %1090 = vmatpush1.bf16.msra.mxu0 0
        %1091 = vmatprep.subr.bf16.mxu0 0
        %1092 = vmatpush1.bf16.msra.mxu0 0
        %1093 = vmatprep.subr.bf16.mxu0 0
        %1094 = vmatpush1.bf16.msra.mxu0 0
        %1095 = vmatprep.subr.bf16.mxu0 0
        %1096 = vmatpush1.bf16.msra.mxu0 0
        %1097 = vmatprep.subr.bf16.mxu0 0
        %1098 = vmatpush1.bf16.msra.mxu0 0
        %1099 = vmatprep.subr.bf16.mxu0 0
        %1100 = vmatpush1.bf16.msra.mxu0 0
        %1101 = vmatprep.subr.bf16.mxu0 0
        %1102 = vmatpush1.bf16.msra.mxu0 0
        %1103 = vmatprep.subr.bf16.mxu0 0
        %1104 = vmatpush1.bf16.msra.mxu0 0
        %1105 = vmatprep.subr.bf16.mxu0 0
        %1106 = vmatpush1.bf16.msra.mxu0 0
        %1107 = vmatprep.subr.bf16.mxu0 0
        %1108 = vmatpush1.bf16.msra.mxu0 0
        %1109 = vmatprep.subr.bf16.mxu0 0
        %1110 = vmatpush1.bf16.msra.mxu0 0
        %1111 = vmatprep.subr.bf16.mxu0 0
        %1112 = vmatpush1.bf16.msra.mxu0 0
        %1113 = vmatprep.subr.bf16.mxu0 0
        %1114 = vmatpush1.bf16.msra.mxu0 0
        %1115 = vmatprep.subr.bf16.mxu0 0
        %1116 = vmatpush1.bf16.msra.mxu0 0
        %1117 = vmatprep.subr.bf16.mxu0 0
        %1118 = vmatpush1.bf16.msra.mxu0 0
        %1119 = vmatprep.mubr.bf16.mxu0 0
        %1120 = vmatmul.mubr.bf16.gmra.mrb[0].mxu0 %v1082
        %v1121 = vpop.f32.mrb[0].mxu0
        %v1122 = vadd.f32 0.0, %v1121
        %v1123 = vpop.f32.mrb[0].mxu0
        %v1124 = vpop.f32.mrb[0].mxu0
        %v1125 = vpop.f32.mrb[0].mxu0
        %1126 = vdwg.mxu0
        %v1128 = vsel %vm797, %v1032, 0
        %v1131 = vsel %vm1037, %v788, 0
        %1133 = vmatprep.subr.bf16.mxu0 0
        %1134 = vmatpush1.bf16.msra.mxu0 %v1131
        %1135 = vmatprep.subr.bf16.mxu0 0
        %1136 = vmatpush1.bf16.msra.mxu0 0
        %1137 = vmatprep.subr.bf16.mxu0 0
        %1138 = vmatpush1.bf16.msra.mxu0 0
        %1139 = vmatprep.subr.bf16.mxu0 0
        %1140 = vmatpush1.bf16.msra.mxu0 0
        %1141 = vmatprep.subr.bf16.mxu0 0
        %1142 = vmatpush1.bf16.msra.mxu0 0
        %1143 = vmatprep.subr.bf16.mxu0 0
        %1144 = vmatpush1.bf16.msra.mxu0 0
        %1145 = vmatprep.subr.bf16.mxu0 0
        %1146 = vmatpush1.bf16.msra.mxu0 0
        %1147 = vmatprep.subr.bf16.mxu0 0
        %1148 = vmatpush1.bf16.msra.mxu0 0
        %1149 = vmatprep.subr.bf16.mxu0 0
        %1150 = vmatpush1.bf16.msra.mxu0 0
        %1151 = vmatprep.subr.bf16.mxu0 0
        %1152 = vmatpush1.bf16.msra.mxu0 0
        %1153 = vmatprep.subr.bf16.mxu0 0
        %1154 = vmatpush1.bf16.msra.mxu0 0
        %1155 = vmatprep.subr.bf16.mxu0 0
        %1156 = vmatpush1.bf16.msra.mxu0 0
        %1157 = vmatprep.subr.bf16.mxu0 0
        %1158 = vmatpush1.bf16.msra.mxu0 0
        %1159 = vmatprep.subr.bf16.mxu0 0
        %1160 = vmatpush1.bf16.msra.mxu0 0
        %1161 = vmatprep.subr.bf16.mxu0 0
        %1162 = vmatpush1.bf16.msra.mxu0 0
        %1163 = vmatprep.subr.bf16.mxu0 0
        %1164 = vmatpush1.bf16.msra.mxu0 0
        %1165 = vmatprep.mubr.bf16.mxu0 0
        %1166 = vmatmul.mubr.bf16.gmra.mrb[0].mxu0 %v1128
        %v1167 = vpop.f32.mrb[0].mxu0
        %v1168 = vadd.f32 0.0, %v1167
        %v1169 = vpop.f32.mrb[0].mxu0
        %v1170 = vpop.f32.mrb[0].mxu0
        %v1171 = vpop.f32.mrb[0].mxu0
        %1172 = vdwg.mxu0
        %v1174 = vsel %vm797, %v1033, 0
        %v1177 = vsel %vm1037, %v789, 0
        %1179 = vmatprep.subr.bf16.mxu0 0
        %1180 = vmatpush1.bf16.msra.mxu0 %v1177
        %1181 = vmatprep.subr.bf16.mxu0 0
        %1182 = vmatpush1.bf16.msra.mxu0 0
        %1183 = vmatprep.subr.bf16.mxu0 0
        %1184 = vmatpush1.bf16.msra.mxu0 0
        %1185 = vmatprep.subr.bf16.mxu0 0
        %1186 = vmatpush1.bf16.msra.mxu0 0
        %1187 = vmatprep.subr.bf16.mxu0 0
        %1188 = vmatpush1.bf16.msra.mxu0 0
        %1189 = vmatprep.subr.bf16.mxu0 0
        %1190 = vmatpush1.bf16.msra.mxu0 0
        %1191 = vmatprep.subr.bf16.mxu0 0
        %1192 = vmatpush1.bf16.msra.mxu0 0
        %1193 = vmatprep.subr.bf16.mxu0 0
        %1194 = vmatpush1.bf16.msra.mxu0 0
        %1195 = vmatprep.subr.bf16.mxu0 0
        %1196 = vmatpush1.bf16.msra.mxu0 0
        %1197 = vmatprep.subr.bf16.mxu0 0
        %1198 = vmatpush1.bf16.msra.mxu0 0
        %1199 = vmatprep.subr.bf16.mxu0 0
        %1200 = vmatpush1.bf16.msra.mxu0 0
        %1201 = vmatprep.subr.bf16.mxu0 0
        %1202 = vmatpush1.bf16.msra.mxu0 0
        %1203 = vmatprep.subr.bf16.mxu0 0
        %1204 = vmatpush1.bf16.msra.mxu0 0
        %1205 = vmatprep.subr.bf16.mxu0 0
        %1206 = vmatpush1.bf16.msra.mxu0 0
        %1207 = vmatprep.subr.bf16.mxu0 0
        %1208 = vmatpush1.bf16.msra.mxu0 0
        %1209 = vmatprep.subr.bf16.mxu0 0
        %1210 = vmatpush1.bf16.msra.mxu0 0
        %1211 = vmatprep.mubr.bf16.mxu0 0
        %1212 = vmatmul.mubr.bf16.gmra.mrb[0].mxu0 %v1174
        %v1213 = vpop.f32.mrb[0].mxu0
        %v1214 = vadd.f32 0.0, %v1213
        %v1215 = vpop.f32.mrb[0].mxu0
        %v1216 = vpop.f32.mrb[0].mxu0
        %v1217 = vpop.f32.mrb[0].mxu0
        %1218 = vdwg.mxu0
        %1220 = vrot.lane.b32.xlu0 %v1122, 8
        %v1221 = vpop.permute.xlu0 %1220
        %1224 = vrot.lane.b32.xlu0 %v1168, 16
        %v1225 = vpop.permute.xlu0 %1224
        %1228 = vrot.lane.b32.xlu0 %v1214, 24
        %v1229 = vpop.permute.xlu0 %1228
        %v1231 = vsel %vm797, %v1076, %v1221
        %vm1232 = vcmask 130048
        %v1233 = vsel %vm1232, %v1231, %v1225
        %vm1234 = vcmask 195584
        %v1235 = vsel %vm1234, %v1233, %v1229
        %v1236 = vpack.c.bf16 %v1235, %v1235
        %v1237 = vld [vmem:[#allocation16] sm:$0xf]
        %v1238 = vld [vmem:[#allocation16 + $0x4] sm:$0xf]
        %v1239 = vld [vmem:[#allocation16 + $0x8] sm:$0xf]
        %v1240 = vld [vmem:[#allocation16 + $0xc] sm:$0xf]
        %v1241 = vld [vmem:[#allocation17] sm:$0x1]
        %v1243 = vlaneseq
        %v1244 = vshrl.u32 %v1243, 7
        %v1245 = vsub.s32 0, %v1244
        %v1246 = vrot.slane %v1241, %v1245
        %v1252 = vunpack.c.l.b16 %v1237
        %v1253 = vunpack.c.l.b16 %v1238
        %v1254 = vunpack.c.l.b16 %v1239
        %v1255 = vunpack.c.l.b16 %v1240
        %v1256 = vpack.c.b16 %v1253, %v1252
        %v1257 = vpack.c.b16 %v1255, %v1254
        %vm1260 = vcmask 261120
        %v1262 = vsel %vm1260, %v1236, 0
        %1264 = vmatprep.subr.bf16.mxu0 0
        %1265 = vmatpush1.bf16.msra.mxu0 %v1256
        %1266 = vmatprep.subr.bf16.mxu0 0
        %1267 = vmatpush1.bf16.msra.mxu0 %v1257
        %1268 = vmatprep.subr.bf16.mxu0 0
        %1269 = vmatpush1.bf16.msra.mxu0 0
        %1270 = vmatprep.subr.bf16.mxu0 0
        %1271 = vmatpush1.bf16.msra.mxu0 0
        %1272 = vmatprep.subr.bf16.mxu0 0
        %1273 = vmatpush1.bf16.msra.mxu0 0
        %1274 = vmatprep.subr.bf16.mxu0 0
        %1275 = vmatpush1.bf16.msra.mxu0 0
        %1276 = vmatprep.subr.bf16.mxu0 0
        %1277 = vmatpush1.bf16.msra.mxu0 0
        %1278 = vmatprep.subr.bf16.mxu0 0
        %1279 = vmatpush1.bf16.msra.mxu0 0
        %1280 = vmatprep.subr.bf16.mxu0 0
        %1281 = vmatpush1.bf16.msra.mxu0 0
        %1282 = vmatprep.subr.bf16.mxu0 0
        %1283 = vmatpush1.bf16.msra.mxu0 0
        %1284 = vmatprep.subr.bf16.mxu0 0
        %1285 = vmatpush1.bf16.msra.mxu0 0
        %1286 = vmatprep.subr.bf16.mxu0 0
        %1287 = vmatpush1.bf16.msra.mxu0 0
        %1288 = vmatprep.subr.bf16.mxu0 0
        %1289 = vmatpush1.bf16.msra.mxu0 0
        %1290 = vmatprep.subr.bf16.mxu0 0
        %1291 = vmatpush1.bf16.msra.mxu0 0
        %1292 = vmatprep.subr.bf16.mxu0 0
        %1293 = vmatpush1.bf16.msra.mxu0 0
        %1294 = vmatprep.subr.bf16.mxu0 0
        %1295 = vmatpush1.bf16.msra.mxu0 0
        %1296 = vmatprep.mubr.bf16.mxu0 0
        %1297 = vmatmul.mubr.bf16.gmra.mrb[0].mxu0 %v1262
        %v1298 = vpop.f32.mrb[0].mxu0
        %v1299 = vadd.f32 %v1246, %v1298
        %v1300 = vpop.f32.mrb[0].mxu0
        %v1301 = vpop.f32.mrb[0].mxu0
        %v1302 = vpop.f32.mrb[0].mxu0
        %1303 = vdwg.mxu0
        %1304 = vst.msk [vmem:[%s526] sm:$0xff] %vm1260, %v1299
        %s1305 = sand.u32 %s248, 1
        %s1306 = scalar_lea.sflag [#allocation7], %s1305
        %s1307 = sand.u32 %s248, 1
        %s1308 = smul.addr %s1307, 8
        %s1309 = scalar_lea.vmem [#allocation19], %s1308
        %s1310 = sand.u32 %s276, 1
        %s1311 = scalar_lea.sflag [#allocation21], %s1310
        %s1312 = sand.u32 %s276, 1
        %s1313 = smul.addr %s1312, 32
        %s1314 = scalar_lea.vmem [#allocation20], %s1313
        // Predicated region
        $region89: #{tpu_custom_call.1} parent=51 // pred_check
          %p1315 = pneg %p258
        $region90: #{tpu_custom_call.1} parent=51 // pred_check_branch
          %1317 = sbr.rel (%p1315) target = $region92
        $region91: #{tpu_custom_call.1} parent=51 // pred_region
          %s1319 = ssub.s32 128, 128
          %1320 = vsyncadd %s1306, %s1319
          %s1321 = sadd.s32 %s43, %s42
          %s1322 = smul.addr %s1321, 128
          %s1323 = scalar_lea.hbm %s8, %s1322
          %s1325 = sshll.u32 %s1309, 4
          %s1326 = int_to_ptr.vmem [resolvable:$true] %s1325
          %1328 = dma.vmem_to_hbm [thread:$0]  %s1326, 128, %s1323, %s1306
        $region92: #{tpu_custom_call.1} parent=51 // pred_fallthru
          _
        // Predicated region
        $region93: #{tpu_custom_call.1} parent=51 // pred_check
          %p1329 = pneg %p286
        $region94: #{tpu_custom_call.1} parent=51 // pred_check_branch
          %1331 = sbr.rel (%p1329) target = $region96
        $region95: #{tpu_custom_call.1} parent=51 // pred_region
          %s1333 = ssub.s32 512, 512
          %1334 = vsyncadd %s1311, %s1333
          %s1335 = smul.addr %s42, 4
          %s1336 = sadd.s32 %s43, %s1335
          %s1337 = smul.addr %s1336, 128
          %s1338 = scalar_lea.hbm %s9, %s1337
          %s1339 = sshll.u32 %s1314, 4
          %s1340 = int_to_ptr.vmem [resolvable:$true] %s1339
          %1345 = dma.vmem_to_hbm [thread:$0]  %s1340, 512, %s1338, %s1311, 128, 128, 8
        $region96: #{tpu_custom_call.1} parent=51 // pred_fallthru
          _
      $region52: #{tpu_custom_call.1} parent=5 // pred_fallthru
        _
      %p1346 = scmp.le.s32.totalorder 2, %s33
      // Predicated region
      $region97: #{tpu_custom_call.1} parent=5 // pred_check
        %p1347 = pneg %p1346
      $region98: #{tpu_custom_call.1} parent=5 // pred_check_branch
        %1349 = sbr.rel (%p1347) target = $region100
      $region99: #{tpu_custom_call.1} parent=5 // pred_region
        %s1350 = ssub.s32 %s33, 2
        // Predicated region
        $region101: #{tpu_custom_call.1} parent=99 // pred_check
          %p1351 = pneg %p264
        $region102: #{tpu_custom_call.1} parent=99 // pred_check_branch
          %1353 = sbr.rel (%p1351) target = $region104
        $region103: #{tpu_custom_call.1} parent=99 // pred_region
          %s1354 = sand.u32 %s249, 1
          %s1355 = scalar_lea.sflag [#allocation7], %s1354
          %s1356 = sand.u32 %s249, 1
          %s1357 = smul.addr %s1356, 8
          %s1358 = scalar_lea.vmem [#allocation19], %s1357
          %1359 = dma.done %s1355, 128
        $region104: #{tpu_custom_call.1} parent=99 // pred_fallthru
          _
        // Predicated region
        $region105: #{tpu_custom_call.1} parent=99 // pred_check
          %p1360 = pneg %p292
        $region106: #{tpu_custom_call.1} parent=99 // pred_check_branch
          %1362 = sbr.rel (%p1360) target = $region108
        $region107: #{tpu_custom_call.1} parent=99 // pred_region
          %s1363 = sand.u32 %s277, 1
          %s1364 = scalar_lea.sflag [#allocation21], %s1363
          %s1365 = sand.u32 %s277, 1
          %s1366 = smul.addr %s1365, 32
          %s1367 = scalar_lea.vmem [#allocation20], %s1366
          %1368 = dma.done %s1364, 512
        $region108: #{tpu_custom_call.1} parent=99 // pred_fallthru
          _
      $region100: #{tpu_custom_call.1} parent=5 // pred_fallthru
        _
    $region6: #{tpu_custom_call.1} parent=1 // loop_footer
      %s37 = sadd.s32 1, %s33
    $region7: #{tpu_custom_call.1} parent=1 // loop_footer_branch
      %32 = sbr.rel target = $region3
    $region8: #{tpu_custom_call.1} parent=1 // loop_exit
      _
    %1369 = vsyncpa [#allocation6], 1
    %s1370 = scalar_lea.sflag [#allocation6], 1
    %1371 = vsyncpa %s1370, 1
    %1372 = vsyncpa [#allocation9], 1
    %s1373 = scalar_lea.sflag [#allocation9], 1
    %1374 = vsyncpa %s1373, 1
    %1375 = vsyncpa [#allocation12], 1
    %s1376 = scalar_lea.sflag [#allocation12], 1
    %1377 = vsyncpa %s1376, 1
    %1378 = vsyncpa [#allocation15], 1
    %1379 = vsyncpa [#allocation18], 1
    %1380 = vsyncpa [#allocation7], 1
    %s1381 = scalar_lea.sflag [#allocation7], 1
    %1382 = vsyncpa %s1381, 1
    %1383 = vsyncpa [#allocation21], 1
    %s1384 = scalar_lea.sflag [#allocation21], 1
    %1385 = vsyncpa %s1384, 1

</llo_original>
